<compile_context>
chip_gen: v5e
topology: v5e:2x2
jax: 0.10.0
libtpu: 0.0.40
codegen_flags: <defaults>
</compile_context>

<pallas_src>
import functools
import math

import jax
import jax.numpy as jnp
from jax import lax
from jax.experimental import pallas as pl
from jax.experimental.pallas import tpu as pltpu


# ----------------------------- kernel helpers --------------------------------


def _rms_norm(x, w, eps=1e-6):
    xf = x.astype(jnp.float32)
    var = jnp.mean(xf * xf, axis=-1, keepdims=True)
    return w * (xf * lax.rsqrt(var + eps))


def _roll_lanes(x, shift):
    """Roll the last (lane) axis by a static amount, jnp.roll semantics."""
    h = x.shape[-1]
    shift = shift % h
    if shift == 0:
        return x
    if h % 128 == 0:
        # Lane-aligned width: XLU rotate lives in its own VLIW slot (~free).
        return pltpu.roll(x, shift, axis=x.ndim - 1)
    # Small / unaligned lane width (toy shapes): slice+concat, proven lowering.
    return jnp.concatenate([x[:, h - shift:], x[:, :h - shift]], axis=-1)


# ----------------------------- kernel -----------------------------------------


def llama_layer_kernel(x_ref, rot_ref, wqkv_ref, wo_ref, wgu_ref, wd_ref,
                       n1_ref, n2_ref, o_ref, attn_ref,
                       *, num_heads, head_dim):
    x = x_ref[0].astype(jnp.float32)          # (S, H) current batch element
    S, H = x.shape
    hd2 = head_dim // 2

    cos_f = rot_ref[0]                         # (S, H) bf16 cos, tiled per head
    sin_a = rot_ref[1]                         # (S, H) bf16 -sin on 1st half of each head, 0 else
    sin_b = rot_ref[2]                         # (S, H) bf16  sin on 2nd half of each head, 0 else
    n1 = n1_ref[...]                           # (1, H) f32
    n2 = n2_ref[...]                           # (1, H) f32

    # ---------------- attention block ----------------
    h = _rms_norm(x, n1).astype(jnp.bfloat16)
    qkv = jnp.dot(h, wqkv_ref[...], preferred_element_type=jnp.float32)   # (S, 3H) f32
    q = qkv[:, :H]              # 1/sqrt(head_dim) already folded into the weight
    k = qkv[:, H:2 * H]
    vb = qkv[:, 2 * H:].astype(jnp.bfloat16)   # V goes straight to bf16

    # Rotary at full (S, H) width: q*cos + rotate_half(q)*sin, expressed with
    # two whole-row rolls so there is no per-head lane slicing.  Values that
    # wrap across head boundaries are multiplied by zeros.  bf16 cos/sin
    # promote to f32 in the VPU mul for free.
    q = q * cos_f + _roll_lanes(q, -hd2) * sin_a + _roll_lanes(q, hd2) * sin_b
    k = k * cos_f + _roll_lanes(k, -hd2) * sin_a + _roll_lanes(k, hd2) * sin_b
    qb = q.astype(jnp.bfloat16)
    kb = k.astype(jnp.bfloat16)

    row = lax.broadcasted_iota(jnp.int32, (S, S), 0)
    col = lax.broadcasted_iota(jnp.int32, (S, S), 1)
    causal = col <= row
    neg_big = jnp.float32(-1e30)   # finite: avoids exp(-inf - -inf)=NaN if masks change

    # TODO(synk): for production sizes (H=4096, S>=2k) replace this resident
    # per-head loop with a flash-style (tq, tk) tiled online softmax that skips
    # fully-masked upper-triangular tiles and streams K/V; also convert to
    # lax.fori_loop / a grid axis to bound the per-head (S,S) live ranges.
    for hh in range(num_heads):                # static unroll over heads
        sl = slice(hh * head_dim, (hh + 1) * head_dim)
        s = lax.dot_general(qb[:, sl], kb[:, sl], (((1,), (1,)), ((), ())),
                            preferred_element_type=jnp.float32)          # (S, S)
        s = jnp.where(causal, s, neg_big)
        p = jnp.exp(s - jnp.max(s, axis=-1, keepdims=True))
        # approx reciprocal (EUP slot); fine for inference / 1e-2 tolerance.
        p = p * pl.reciprocal(jnp.sum(p, axis=-1, keepdims=True), approx=True)
        attn_ref[:, sl] = jnp.dot(p.astype(jnp.bfloat16), vb[:, sl],
                                  preferred_element_type=jnp.float32
                                  ).astype(jnp.bfloat16)

    # bf16 slab feeds the o_proj matmul directly (no readback cast).
    x1 = x + jnp.dot(attn_ref[...], wo_ref[...], preferred_element_type=jnp.float32)

    # ---------------- MLP block ----------------
    h2 = _rms_norm(x1, n2).astype(jnp.bfloat16)
    gu = jnp.dot(h2, wgu_ref[...], preferred_element_type=jnp.float32)   # (S, 2I)
    inter = gu.shape[-1] // 2
    g = gu[:, :inter]
    u = gu[:, inter:]
    act = (g * jax.nn.sigmoid(g)) * u                                     # SiLU * up, f32
    # TODO(synk): at production I (~11k-14k) tile this over the intermediate dim
    # (accumulate into an (S,H) f32 scratch with pl.when init/finalize) and
    # stream wgu/wd tiles from HBM (memory_space=pl.ANY + pltpu.emit_pipeline)
    # instead of keeping them fully VMEM-resident.
    d = jnp.dot(act.astype(jnp.bfloat16), wd_ref[...],
                preferred_element_type=jnp.float32)                       # (S, H)

    o_ref[0] = (x1 + d).astype(o_ref.dtype)


# ----------------------------- wrapper ---------------------------------------


def _make_call(B, S, H, inter, num_heads, head_dim, out_dtype,
               single_buffer_consts):
    kernel = functools.partial(llama_layer_kernel,
                               num_heads=num_heads, head_dim=head_dim)

    spec_kw = {}
    if single_buffer_consts:
        # Batch-invariant operands are DMA'd once; single-buffer them.
        spec_kw = dict(pipeline_mode=pl.Buffered(1))

    def const_spec(shape):
        return pl.BlockSpec(shape, lambda b: (0,) * len(shape), **spec_kw)

    const_shapes = [
        ((3, S, H), jnp.bfloat16),        # rotary planes (cos, -sin half, +sin half)
        ((H, 3 * H), jnp.bfloat16),       # fused q|k|v   (scale folded into q cols)
        ((H, H), jnp.bfloat16),           # o_proj
        ((H, 2 * inter), jnp.bfloat16),   # fused gate|up
        ((inter, H), jnp.bfloat16),       # down_proj
        ((1, H), jnp.float32),            # n1
        ((1, H), jnp.float32),            # n2
    ]

    # VMEM budget estimate: activation in/out blocks (double-buffered),
    # constants (1 or 2 buffers), the bf16 attention scratch slab, plus a rough
    # allowance for compiler-managed intermediates (qkv / scores / gate-up).
    isz = lambda dt: jnp.dtype(dt).itemsize
    n_const_bufs = 1 if single_buffer_consts else 2
    est = 2 * 2 * S * H * isz(out_dtype)                                  # x + out blocks
    est += n_const_bufs * sum(math.prod(s) * isz(dt) for s, dt in const_shapes)
    est += S * H * isz(jnp.bfloat16)                                      # attn slab
    est += S * 3 * H * 4 + S * S * 4 + S * 2 * inter * 4 + 4 * S * H * 4  # intermediates
    vmem_limit = min(128 * 1024 * 1024, max(int(1.5 * est), 32 * 1024 * 1024))

    return pl.pallas_call(
        kernel,
        out_shape=jax.ShapeDtypeStruct((B, S, H), out_dtype),
        grid=(B,),
        in_specs=[pl.BlockSpec((1, S, H), lambda b: (b, 0, 0))]           # x
                 + [const_spec(s) for s, _ in const_shapes],
        out_specs=pl.BlockSpec((1, S, H), lambda b: (b, 0, 0)),
        scratch_shapes=[pltpu.VMEM((S, H), jnp.bfloat16)],                # attn slab
        compiler_params=pltpu.CompilerParams(
            # TODO(synk): add a 2nd "parallel" axis (S tiles or heads) so both
            # v7x TensorCores have work when B == 1 / B is odd.
            dimension_semantics=("parallel",),
            vmem_limit_bytes=vmem_limit),
    )


def llama_layer(x, rotary, params, num_heads):
    B, S, H = x.shape
    head_dim = H // num_heads
    inter = params["wg"].shape[1]

    # ---- parameter / rotary preprocessing (plain JAX glue, outside kernel) ----
    scale = 1.0 / math.sqrt(head_dim)
    # TODO(synk): on v5e/v6e pass the ternary weights as int8 + per-tensor f32
    # scale to use the native int MXU path (v7x has no int MXU; keep bf16 there).
    wqkv = jnp.concatenate(
        [params["wq"] * scale, params["wk"], params["wv"]],
        axis=1).astype(jnp.bfloat16)                                   # (H, 3H)
    wgu = jnp.concatenate([params["wg"], params["wu"]],
                          axis=1).astype(jnp.bfloat16)                 # (H, 2I)
    wo = params["wo"].astype(jnp.bfloat16)                             # (H, H)
    wd = params["wd"].astype(jnp.bfloat16)                             # (I, H)
    n1 = params["n1"].astype(jnp.float32)
    n2 = params["n2"].astype(jnp.float32)

    sin, cos = rotary[0], rotary[1]                                    # (S, hd)
    half = jnp.arange(head_dim) < (head_dim // 2)
    cos_full = jnp.tile(cos, (1, num_heads))                           # (S, H)
    sin_a = jnp.tile(jnp.where(half, -sin, 0.0), (1, num_heads))       # (S, H)
    sin_b = jnp.tile(jnp.where(half, 0.0, sin), (1, num_heads))        # (S, H)
    rot_full = jnp.stack([cos_full, sin_a, sin_b], 0).astype(jnp.bfloat16)

    args = (x, rot_full, wqkv, wo, wgu, wd, n1, n2)

    def run(single_buffer_consts):
        call = _make_call(B, S, H, inter, num_heads, head_dim, x.dtype,
                          single_buffer_consts)
        return call(*args)

    try:
        out = run(True)
        jax.block_until_ready(out)
        return out
    except Exception:
        # pl.Buffered(1) not supported by this JAX/Mosaic build: fall back to
        # the default double-buffered pipeline (semantically identical).
        return run(False)


# ------------------------ parameter setup (glue) ------------------------------


def bitlinear_effective_weight(key, out_features, in_features, eps=1e-5):
    """Effective forward-pass weight of BitLinear:
       clamp(round(W/scale), -1, 1) * scale, with scale = mean|W| + eps.
       (The straight-through term `Wq - Wq.detach()` is zero in the forward
       value.)  Returned transposed as [in, out]."""
    w = jax.random.normal(key, (out_features, in_features), jnp.float32) * 0.05
    scale = jnp.mean(jnp.abs(w)) + eps
    wq = jnp.clip(jnp.round(w / scale), -1.0, 1.0)
    return (wq * scale).T
    # TODO(synk): BitLinear.encode / load_quantized (1.6-bit packing) are
    # offline serialization helpers, not part of the forward pass.


def make_rotary(S, head_dim):
    pos = jnp.arange(S, dtype=jnp.float32)
    inv_freq = 1.0 / (10000.0 ** (jnp.arange(0, head_dim, 2, dtype=jnp.float32)
                                  / head_dim))
    ang = pos[:, None] * inv_freq[None, :]
    emb = jnp.concatenate([ang, ang], axis=-1)           # (S, head_dim)
    return jnp.stack([jnp.sin(emb), jnp.cos(emb)], 0)    # (2, S, head_dim)


# --------------------------- pure-JAX reference --------------------------------


def ref_layer(x, rotary, p, num_heads):
    B, S, H = x.shape
    hd = H // num_heads

    def rms(t, w, eps=1e-6):
        v = jnp.mean(t.astype(jnp.float32) ** 2, -1, keepdims=True)
        return w * (t * lax.rsqrt(v + eps))

    def rot_half(t):
        d = t.shape[-1] // 2
        return jnp.concatenate([-t[..., d:], t[..., :d]], -1)

    h = rms(x, p["n1"][0])
    q = (h @ p["wq"]).reshape(B, S, num_heads, hd)
    k = (h @ p["wk"]).reshape(B, S, num_heads, hd)
    v = (h @ p["wv"]).reshape(B, S, num_heads, hd)
    sin = rotary[0][None, :, None, :]
    cos = rotary[1][None, :, None, :]
    q = q * cos + rot_half(q) * sin
    k = k * cos + rot_half(k) * sin
    s = jnp.einsum("bqhd,bkhd->bhqk", q, k) / math.sqrt(hd)
    mask = jnp.tril(jnp.ones((S, S), bool))
    s = jnp.where(mask, s, -jnp.inf)
    pa = jax.nn.softmax(s, -1)
    o = jnp.einsum("bhqk,bkhd->bqhd", pa, v).reshape(B, S, H)
    x1 = x + o @ p["wo"]
    h2 = rms(x1, p["n2"][0])
    g = h2 @ p["wg"]
    u = h2 @ p["wu"]
    return x1 + (jax.nn.silu(g) * u) @ p["wd"]


# ----------------------------------- main --------------------------------------

if __name__ == "__main__":
    B, S, H, NUM_HEADS, INTER = 2, 8, 32, 4, 64
    HEAD_DIM = H // NUM_HEADS

    key = jax.random.PRNGKey(0)
    ks = jax.random.split(key, 8)
    params = {
        "wq": bitlinear_effective_weight(ks[0], H, H),
        "wk": bitlinear_effective_weight(ks[1], H, H),
        "wv": bitlinear_effective_weight(ks[2], H, H),
        "wo": bitlinear_effective_weight(ks[3], H, H),
        "wg": bitlinear_effective_weight(ks[4], INTER, H),
        "wu": bitlinear_effective_weight(ks[5], INTER, H),
        "wd": bitlinear_effective_weight(ks[6], H, INTER),
        "n1": jnp.ones((1, H), jnp.float32),   # LlamaNorm inits to ones
        "n2": jnp.ones((1, H), jnp.float32),
    }
    x = jax.random.normal(ks[7], (B, S, H), jnp.float32)
    rotary = make_rotary(S, HEAD_DIM)

    out = llama_layer(x, rotary, params, NUM_HEADS)
    jax.block_until_ready(out)

    ref = ref_layer(x, rotary, params, NUM_HEADS)
    assert out.shape == (B, S, H)
    assert bool(jnp.allclose(out, ref, atol=1e-2, rtol=1e-2)), (
        "max abs diff = %f" % float(jnp.max(jnp.abs(out - ref))))

    print("KERNEL_OK")
</pallas_src>

<mosaic_0001>
module attributes {stable_mosaic.version = 11 : i64} {
  func.func @llama_layer_kernel(%arg0: i32, %arg1: memref<1x8x32xf32, #tpu.memory_space<vmem>>, %arg2: memref<3x8x32xbf16, #tpu.memory_space<vmem>>, %arg3: memref<32x96xbf16, #tpu.memory_space<vmem>>, %arg4: memref<32x32xbf16, #tpu.memory_space<vmem>>, %arg5: memref<32x128xbf16, #tpu.memory_space<vmem>>, %arg6: memref<64x32xbf16, #tpu.memory_space<vmem>>, %arg7: memref<1x32xf32, #tpu.memory_space<vmem>>, %arg8: memref<1x32xf32, #tpu.memory_space<vmem>>, %arg9: memref<1x8x32xf32, #tpu.memory_space<vmem>>, %arg10: memref<8x32xbf16, #tpu.memory_space<vmem>>) attributes {dimension_semantics = [#tpu.dimension_semantics<parallel>], iteration_bounds = array<i64: 2>, scalar_prefetch = 0 : i64, scratch_operands = 1 : i64, tpu.core_type = #tpu.core_type<tc>, window_params = [{transform_indices = @transform_0, window_bounds = array<i64: 1, 8, 32>}, {pipeline_mode = #tpu.pipeline_mode<synchronous>, transform_indices = @transform_1, window_bounds = array<i64: 3, 8, 32>}, {pipeline_mode = #tpu.pipeline_mode<synchronous>, transform_indices = @transform_2, window_bounds = array<i64: 32, 96>}, {pipeline_mode = #tpu.pipeline_mode<synchronous>, transform_indices = @transform_3, window_bounds = array<i64: 32, 32>}, {pipeline_mode = #tpu.pipeline_mode<synchronous>, transform_indices = @transform_4, window_bounds = array<i64: 32, 128>}, {pipeline_mode = #tpu.pipeline_mode<synchronous>, transform_indices = @transform_5, window_bounds = array<i64: 64, 32>}, {pipeline_mode = #tpu.pipeline_mode<synchronous>, transform_indices = @transform_6, window_bounds = array<i64: 1, 32>}, {pipeline_mode = #tpu.pipeline_mode<synchronous>, transform_indices = @transform_7, window_bounds = array<i64: 1, 32>}, {transform_indices = @transform_8, window_bounds = array<i64: 1, 8, 32>}]} {
    %c0 = arith.constant 0 : index
    %c0_0 = arith.constant 0 : index
    %c0_1 = arith.constant 0 : index
    %0 = vector.load %arg1[%c0, %c0_0, %c0_1] : memref<1x8x32xf32, #tpu.memory_space<vmem>>, vector<1x8x32xf32>
    %1 = vector.shape_cast %0 : vector<1x8x32xf32> to vector<8x32xf32>
    %c0_2 = arith.constant 0 : index
    %c0_3 = arith.constant 0 : index
    %c0_4 = arith.constant 0 : index
    %2 = vector.load %arg2[%c0_2, %c0_3, %c0_4] : memref<3x8x32xbf16, #tpu.memory_space<vmem>>, vector<1x8x32xbf16>
    %3 = vector.shape_cast %2 : vector<1x8x32xbf16> to vector<8x32xbf16>
    %c1 = arith.constant 1 : index
    %c0_5 = arith.constant 0 : index
    %c0_6 = arith.constant 0 : index
    %4 = vector.load %arg2[%c1, %c0_5, %c0_6] : memref<3x8x32xbf16, #tpu.memory_space<vmem>>, vector<1x8x32xbf16>
    %5 = vector.shape_cast %4 : vector<1x8x32xbf16> to vector<8x32xbf16>
    %c2 = arith.constant 2 : index
    %c0_7 = arith.constant 0 : index
    %c0_8 = arith.constant 0 : index
    %6 = vector.load %arg2[%c2, %c0_7, %c0_8] : memref<3x8x32xbf16, #tpu.memory_space<vmem>>, vector<1x8x32xbf16>
    %7 = vector.shape_cast %6 : vector<1x8x32xbf16> to vector<8x32xbf16>
    %c0_9 = arith.constant 0 : index
    %c0_10 = arith.constant 0 : index
    %8 = vector.load %arg7[%c0_9, %c0_10] : memref<1x32xf32, #tpu.memory_space<vmem>>, vector<1x32xf32>
    %c0_11 = arith.constant 0 : index
    %c0_12 = arith.constant 0 : index
    %9 = vector.load %arg8[%c0_11, %c0_12] : memref<1x32xf32, #tpu.memory_space<vmem>>, vector<1x32xf32>
    %10 = arith.mulf %1, %1 : vector<8x32xf32>
    %cst = arith.constant dense<0.000000e+00> : vector<8xf32>
    %11 = vector.multi_reduction <add>, %10, %cst [1] : vector<8x32xf32> to vector<8xf32>
    %12 = vector.shape_cast %11 : vector<8xf32> to vector<8x1xf32>
    %cst_13 = arith.constant 3.200000e+01 : f32
    %13 = vector.broadcast %cst_13 : f32 to vector<8x1xf32>
    %14 = arith.divf %12, %13 : vector<8x1xf32>
    %cst_14 = arith.constant 9.99999997E-7 : f32
    %15 = vector.broadcast %cst_14 : f32 to vector<8x1xf32>
    %16 = arith.addf %14, %15 : vector<8x1xf32>
    %17 = math.rsqrt %16 : vector<8x1xf32>
    %18 = vector.broadcast %17 : vector<8x1xf32> to vector<8x32xf32>
    %19 = arith.mulf %1, %18 : vector<8x32xf32>
    %20 = vector.broadcast %8 : vector<1x32xf32> to vector<8x32xf32>
    %21 = arith.mulf %20, %19 : vector<8x32xf32>
    %22 = arith.truncf %21 : vector<8x32xf32> to vector<8x32xbf16>
    %c0_15 = arith.constant 0 : index
    %c0_16 = arith.constant 0 : index
    %23 = vector.load %arg3[%c0_15, %c0_16] : memref<32x96xbf16, #tpu.memory_space<vmem>>, vector<32x96xbf16>
    %cst_17 = arith.constant dense<0.000000e+00> : vector<8x96xf32>
    %24 = tpu.matmul %22, %23, %cst_17 {dimension_numbers = #tpu.dot_dimension_numbers<[1], [0], [0], [1], [0, 0, 1, 1], [], []>} : vector<8x32xbf16>, vector<32x96xbf16>, vector<8x96xf32> -> vector<8x96xf32>
    %25 = vector.extract_strided_slice %24 {offsets = [0, 0], sizes = [8, 32], strides = [1, 1]} : vector<8x96xf32> to vector<8x32xf32>
    %26 = vector.extract_strided_slice %24 {offsets = [0, 32], sizes = [8, 32], strides = [1, 1]} : vector<8x96xf32> to vector<8x32xf32>
    %27 = vector.extract_strided_slice %24 {offsets = [0, 64], sizes = [8, 32], strides = [1, 1]} : vector<8x96xf32> to vector<8x32xf32>
    %28 = arith.truncf %27 : vector<8x32xf32> to vector<8x32xbf16>
    %29 = arith.extf %3 : vector<8x32xbf16> to vector<8x32xf32>
    %30 = arith.mulf %25, %29 : vector<8x32xf32>
    %31 = vector.extract_strided_slice %25 {offsets = [0, 4], sizes = [8, 28], strides = [1, 1]} : vector<8x32xf32> to vector<8x28xf32>
    %32 = vector.extract_strided_slice %25 {offsets = [0, 0], sizes = [8, 4], strides = [1, 1]} : vector<8x32xf32> to vector<8x4xf32>
    %33 = tpu.concatenate %31, %32 in 1 : vector<8x28xf32>, vector<8x4xf32> -> vector<8x32xf32>
    %34 = arith.extf %5 : vector<8x32xbf16> to vector<8x32xf32>
    %35 = arith.mulf %33, %34 : vector<8x32xf32>
    %36 = arith.addf %30, %35 : vector<8x32xf32>
    %37 = vector.extract_strided_slice %25 {offsets = [0, 28], sizes = [8, 4], strides = [1, 1]} : vector<8x32xf32> to vector<8x4xf32>
    %38 = vector.extract_strided_slice %25 {offsets = [0, 0], sizes = [8, 28], strides = [1, 1]} : vector<8x32xf32> to vector<8x28xf32>
    %39 = tpu.concatenate %37, %38 in 1 : vector<8x4xf32>, vector<8x28xf32> -> vector<8x32xf32>
    %40 = arith.extf %7 : vector<8x32xbf16> to vector<8x32xf32>
    %41 = arith.mulf %39, %40 : vector<8x32xf32>
    %42 = arith.addf %36, %41 : vector<8x32xf32>
    %43 = arith.extf %3 : vector<8x32xbf16> to vector<8x32xf32>
    %44 = arith.mulf %26, %43 : vector<8x32xf32>
    %45 = vector.extract_strided_slice %26 {offsets = [0, 4], sizes = [8, 28], strides = [1, 1]} : vector<8x32xf32> to vector<8x28xf32>
    %46 = vector.extract_strided_slice %26 {offsets = [0, 0], sizes = [8, 4], strides = [1, 1]} : vector<8x32xf32> to vector<8x4xf32>
    %47 = tpu.concatenate %45, %46 in 1 : vector<8x28xf32>, vector<8x4xf32> -> vector<8x32xf32>
    %48 = arith.extf %5 : vector<8x32xbf16> to vector<8x32xf32>
    %49 = arith.mulf %47, %48 : vector<8x32xf32>
    %50 = arith.addf %44, %49 : vector<8x32xf32>
    %51 = vector.extract_strided_slice %26 {offsets = [0, 28], sizes = [8, 4], strides = [1, 1]} : vector<8x32xf32> to vector<8x4xf32>
    %52 = vector.extract_strided_slice %26 {offsets = [0, 0], sizes = [8, 28], strides = [1, 1]} : vector<8x32xf32> to vector<8x28xf32>
    %53 = tpu.concatenate %51, %52 in 1 : vector<8x4xf32>, vector<8x28xf32> -> vector<8x32xf32>
    %54 = arith.extf %7 : vector<8x32xbf16> to vector<8x32xf32>
    %55 = arith.mulf %53, %54 : vector<8x32xf32>
    %56 = arith.addf %50, %55 : vector<8x32xf32>
    %57 = arith.truncf %42 : vector<8x32xf32> to vector<8x32xbf16>
    %58 = arith.truncf %56 : vector<8x32xf32> to vector<8x32xbf16>
    %59 = tpu.iota {dimensions = array<i32: 0>} : vector<8x8xi32>
    %60 = tpu.iota {dimensions = array<i32: 1>} : vector<8x8xi32>
    %61 = arith.cmpi sle, %60, %59 : vector<8x8xi32>
    %62 = vector.extract_strided_slice %57 {offsets = [0, 0], sizes = [8, 8], strides = [1, 1]} : vector<8x32xbf16> to vector<8x8xbf16>
    %63 = vector.extract_strided_slice %58 {offsets = [0, 0], sizes = [8, 8], strides = [1, 1]} : vector<8x32xbf16> to vector<8x8xbf16>
    %cst_18 = arith.constant dense<0.000000e+00> : vector<8x8xf32>
    %64 = tpu.matmul %62, %63, %cst_18 {dimension_numbers = #tpu.dot_dimension_numbers<[1], [1], [0], [0], [0, 0, 1, 0], [], []>} : vector<8x8xbf16>, vector<8x8xbf16>, vector<8x8xf32> -> vector<8x8xf32>
    %cst_19 = arith.constant -1.000000e+30 : f32
    %65 = vector.broadcast %cst_19 : f32 to vector<8x8xf32>
    %66 = arith.select %61, %64, %65 : vector<8x8xi1>, vector<8x8xf32>
    %cst_20 = arith.constant dense<0xFF800000> : vector<8xf32>
    %67 = vector.multi_reduction <maximumf>, %66, %cst_20 [1] : vector<8x8xf32> to vector<8xf32>
    %68 = vector.shape_cast %67 : vector<8xf32> to vector<8x1xf32>
    %69 = vector.broadcast %68 : vector<8x1xf32> to vector<8x8xf32>
    %70 = arith.subf %66, %69 : vector<8x8xf32>
    %71 = math.exp %70 : vector<8x8xf32>
    %cst_21 = arith.constant dense<0.000000e+00> : vector<8xf32>
    %72 = vector.multi_reduction <add>, %71, %cst_21 [1] : vector<8x8xf32> to vector<8xf32>
    %73 = vector.shape_cast %72 : vector<8xf32> to vector<8x1xf32>
    %74 = tpu.reciprocal %73 {approx = true} : vector<8x1xf32> -> vector<8x1xf32>
    %75 = vector.broadcast %74 : vector<8x1xf32> to vector<8x8xf32>
    %76 = arith.mulf %71, %75 : vector<8x8xf32>
    %77 = arith.truncf %76 : vector<8x8xf32> to vector<8x8xbf16>
    %78 = vector.extract_strided_slice %28 {offsets = [0, 0], sizes = [8, 8], strides = [1, 1]} : vector<8x32xbf16> to vector<8x8xbf16>
    %cst_22 = arith.constant dense<0.000000e+00> : vector<8x8xf32>
    %79 = tpu.matmul %77, %78, %cst_22 {dimension_numbers = #tpu.dot_dimension_numbers<[1], [0], [0], [1], [0, 0, 1, 1], [], []>} : vector<8x8xbf16>, vector<8x8xbf16>, vector<8x8xf32> -> vector<8x8xf32>
    %80 = arith.truncf %79 : vector<8x8xf32> to vector<8x8xbf16>
    %c0_23 = arith.constant 0 : index
    %c0_24 = arith.constant 0 : index
    %81 = vector.load %arg10[%c0_23, %c0_24] : memref<8x32xbf16, #tpu.memory_space<vmem>>, vector<8x8xbf16>
    tpu.vector_store %arg10[%c0_23, %c0_24], %80 {strides = array<i32>} : memref<8x32xbf16, #tpu.memory_space<vmem>>, vector<8x8xbf16>,
    %82 = vector.extract_strided_slice %57 {offsets = [0, 8], sizes = [8, 8], strides = [1, 1]} : vector<8x32xbf16> to vector<8x8xbf16>
    %83 = vector.extract_strided_slice %58 {offsets = [0, 8], sizes = [8, 8], strides = [1, 1]} : vector<8x32xbf16> to vector<8x8xbf16>
    %cst_25 = arith.constant dense<0.000000e+00> : vector<8x8xf32>
    %84 = tpu.matmul %82, %83, %cst_25 {dimension_numbers = #tpu.dot_dimension_numbers<[1], [1], [0], [0], [0, 0, 1, 0], [], []>} : vector<8x8xbf16>, vector<8x8xbf16>, vector<8x8xf32> -> vector<8x8xf32>
    %cst_26 = arith.constant -1.000000e+30 : f32
    %85 = vector.broadcast %cst_26 : f32 to vector<8x8xf32>
    %86 = arith.select %61, %84, %85 : vector<8x8xi1>, vector<8x8xf32>
    %cst_27 = arith.constant dense<0xFF800000> : vector<8xf32>
    %87 = vector.multi_reduction <maximumf>, %86, %cst_27 [1] : vector<8x8xf32> to vector<8xf32>
    %88 = vector.shape_cast %87 : vector<8xf32> to vector<8x1xf32>
    %89 = vector.broadcast %88 : vector<8x1xf32> to vector<8x8xf32>
    %90 = arith.subf %86, %89 : vector<8x8xf32>
    %91 = math.exp %90 : vector<8x8xf32>
    %cst_28 = arith.constant dense<0.000000e+00> : vector<8xf32>
    %92 = vector.multi_reduction <add>, %91, %cst_28 [1] : vector<8x8xf32> to vector<8xf32>
    %93 = vector.shape_cast %92 : vector<8xf32> to vector<8x1xf32>
    %94 = tpu.reciprocal %93 {approx = true} : vector<8x1xf32> -> vector<8x1xf32>
    %95 = vector.broadcast %94 : vector<8x1xf32> to vector<8x8xf32>
    %96 = arith.mulf %91, %95 : vector<8x8xf32>
    %97 = arith.truncf %96 : vector<8x8xf32> to vector<8x8xbf16>
    %98 = vector.extract_strided_slice %28 {offsets = [0, 8], sizes = [8, 8], strides = [1, 1]} : vector<8x32xbf16> to vector<8x8xbf16>
    %cst_29 = arith.constant dense<0.000000e+00> : vector<8x8xf32>
    %99 = tpu.matmul %97, %98, %cst_29 {dimension_numbers = #tpu.dot_dimension_numbers<[1], [0], [0], [1], [0, 0, 1, 1], [], []>} : vector<8x8xbf16>, vector<8x8xbf16>, vector<8x8xf32> -> vector<8x8xf32>
    %100 = arith.truncf %99 : vector<8x8xf32> to vector<8x8xbf16>
    %c0_30 = arith.constant 0 : index
    %c8 = arith.constant 8 : index
    %101 = vector.load %arg10[%c0_30, %c8] : memref<8x32xbf16, #tpu.memory_space<vmem>>, vector<8x8xbf16>
    tpu.vector_store %arg10[%c0_30, %c8], %100 {strides = array<i32>} : memref<8x32xbf16, #tpu.memory_space<vmem>>, vector<8x8xbf16>,
    %102 = vector.extract_strided_slice %57 {offsets = [0, 16], sizes = [8, 8], strides = [1, 1]} : vector<8x32xbf16> to vector<8x8xbf16>
    %103 = vector.extract_strided_slice %58 {offsets = [0, 16], sizes = [8, 8], strides = [1, 1]} : vector<8x32xbf16> to vector<8x8xbf16>
    %cst_31 = arith.constant dense<0.000000e+00> : vector<8x8xf32>
    %104 = tpu.matmul %102, %103, %cst_31 {dimension_numbers = #tpu.dot_dimension_numbers<[1], [1], [0], [0], [0, 0, 1, 0], [], []>} : vector<8x8xbf16>, vector<8x8xbf16>, vector<8x8xf32> -> vector<8x8xf32>
    %cst_32 = arith.constant -1.000000e+30 : f32
    %105 = vector.broadcast %cst_32 : f32 to vector<8x8xf32>
    %106 = arith.select %61, %104, %105 : vector<8x8xi1>, vector<8x8xf32>
    %cst_33 = arith.constant dense<0xFF800000> : vector<8xf32>
    %107 = vector.multi_reduction <maximumf>, %106, %cst_33 [1] : vector<8x8xf32> to vector<8xf32>
    %108 = vector.shape_cast %107 : vector<8xf32> to vector<8x1xf32>
    %109 = vector.broadcast %108 : vector<8x1xf32> to vector<8x8xf32>
    %110 = arith.subf %106, %109 : vector<8x8xf32>
    %111 = math.exp %110 : vector<8x8xf32>
    %cst_34 = arith.constant dense<0.000000e+00> : vector<8xf32>
    %112 = vector.multi_reduction <add>, %111, %cst_34 [1] : vector<8x8xf32> to vector<8xf32>
    %113 = vector.shape_cast %112 : vector<8xf32> to vector<8x1xf32>
    %114 = tpu.reciprocal %113 {approx = true} : vector<8x1xf32> -> vector<8x1xf32>
    %115 = vector.broadcast %114 : vector<8x1xf32> to vector<8x8xf32>
    %116 = arith.mulf %111, %115 : vector<8x8xf32>
    %117 = arith.truncf %116 : vector<8x8xf32> to vector<8x8xbf16>
    %118 = vector.extract_strided_slice %28 {offsets = [0, 16], sizes = [8, 8], strides = [1, 1]} : vector<8x32xbf16> to vector<8x8xbf16>
    %cst_35 = arith.constant dense<0.000000e+00> : vector<8x8xf32>
    %119 = tpu.matmul %117, %118, %cst_35 {dimension_numbers = #tpu.dot_dimension_numbers<[1], [0], [0], [1], [0, 0, 1, 1], [], []>} : vector<8x8xbf16>, vector<8x8xbf16>, vector<8x8xf32> -> vector<8x8xf32>
    %120 = arith.truncf %119 : vector<8x8xf32> to vector<8x8xbf16>
    %c0_36 = arith.constant 0 : index
    %c16 = arith.constant 16 : index
    %121 = vector.load %arg10[%c0_36, %c16] : memref<8x32xbf16, #tpu.memory_space<vmem>>, vector<8x8xbf16>
    tpu.vector_store %arg10[%c0_36, %c16], %120 {strides = array<i32>} : memref<8x32xbf16, #tpu.memory_space<vmem>>, vector<8x8xbf16>,
    %122 = vector.extract_strided_slice %57 {offsets = [0, 24], sizes = [8, 8], strides = [1, 1]} : vector<8x32xbf16> to vector<8x8xbf16>
    %123 = vector.extract_strided_slice %58 {offsets = [0, 24], sizes = [8, 8], strides = [1, 1]} : vector<8x32xbf16> to vector<8x8xbf16>
    %cst_37 = arith.constant dense<0.000000e+00> : vector<8x8xf32>
    %124 = tpu.matmul %122, %123, %cst_37 {dimension_numbers = #tpu.dot_dimension_numbers<[1], [1], [0], [0], [0, 0, 1, 0], [], []>} : vector<8x8xbf16>, vector<8x8xbf16>, vector<8x8xf32> -> vector<8x8xf32>
    %cst_38 = arith.constant -1.000000e+30 : f32
    %125 = vector.broadcast %cst_38 : f32 to vector<8x8xf32>
    %126 = arith.select %61, %124, %125 : vector<8x8xi1>, vector<8x8xf32>
    %cst_39 = arith.constant dense<0xFF800000> : vector<8xf32>
    %127 = vector.multi_reduction <maximumf>, %126, %cst_39 [1] : vector<8x8xf32> to vector<8xf32>
    %128 = vector.shape_cast %127 : vector<8xf32> to vector<8x1xf32>
    %129 = vector.broadcast %128 : vector<8x1xf32> to vector<8x8xf32>
    %130 = arith.subf %126, %129 : vector<8x8xf32>
    %131 = math.exp %130 : vector<8x8xf32>
    %cst_40 = arith.constant dense<0.000000e+00> : vector<8xf32>
    %132 = vector.multi_reduction <add>, %131, %cst_40 [1] : vector<8x8xf32> to vector<8xf32>
    %133 = vector.shape_cast %132 : vector<8xf32> to vector<8x1xf32>
    %134 = tpu.reciprocal %133 {approx = true} : vector<8x1xf32> -> vector<8x1xf32>
    %135 = vector.broadcast %134 : vector<8x1xf32> to vector<8x8xf32>
    %136 = arith.mulf %131, %135 : vector<8x8xf32>
    %137 = arith.truncf %136 : vector<8x8xf32> to vector<8x8xbf16>
    %138 = vector.extract_strided_slice %28 {offsets = [0, 24], sizes = [8, 8], strides = [1, 1]} : vector<8x32xbf16> to vector<8x8xbf16>
    %cst_41 = arith.constant dense<0.000000e+00> : vector<8x8xf32>
    %139 = tpu.matmul %137, %138, %cst_41 {dimension_numbers = #tpu.dot_dimension_numbers<[1], [0], [0], [1], [0, 0, 1, 1], [], []>} : vector<8x8xbf16>, vector<8x8xbf16>, vector<8x8xf32> -> vector<8x8xf32>
    %140 = arith.truncf %139 : vector<8x8xf32> to vector<8x8xbf16>
    %c0_42 = arith.constant 0 : index
    %c24 = arith.constant 24 : index
    %141 = vector.load %arg10[%c0_42, %c24] : memref<8x32xbf16, #tpu.memory_space<vmem>>, vector<8x8xbf16>
    tpu.vector_store %arg10[%c0_42, %c24], %140 {strides = array<i32>} : memref<8x32xbf16, #tpu.memory_space<vmem>>, vector<8x8xbf16>,
    %c0_43 = arith.constant 0 : index
    %c0_44 = arith.constant 0 : index
    %142 = vector.load %arg10[%c0_43, %c0_44] : memref<8x32xbf16, #tpu.memory_space<vmem>>, vector<8x32xbf16>
    %c0_45 = arith.constant 0 : index
    %c0_46 = arith.constant 0 : index
    %143 = vector.load %arg4[%c0_45, %c0_46] : memref<32x32xbf16, #tpu.memory_space<vmem>>, vector<32x32xbf16>
    %cst_47 = arith.constant dense<0.000000e+00> : vector<8x32xf32>
    %144 = tpu.matmul %142, %143, %cst_47 {dimension_numbers = #tpu.dot_dimension_numbers<[1], [0], [0], [1], [0, 0, 1, 1], [], []>} : vector<8x32xbf16>, vector<32x32xbf16>, vector<8x32xf32> -> vector<8x32xf32>
    %145 = arith.addf %1, %144 : vector<8x32xf32>
    %146 = arith.mulf %145, %145 : vector<8x32xf32>
    %cst_48 = arith.constant dense<0.000000e+00> : vector<8xf32>
    %147 = vector.multi_reduction <add>, %146, %cst_48 [1] : vector<8x32xf32> to vector<8xf32>
    %148 = vector.shape_cast %147 : vector<8xf32> to vector<8x1xf32>
    %cst_49 = arith.constant 3.200000e+01 : f32
    %149 = vector.broadcast %cst_49 : f32 to vector<8x1xf32>
    %150 = arith.divf %148, %149 : vector<8x1xf32>
    %cst_50 = arith.constant 9.99999997E-7 : f32
    %151 = vector.broadcast %cst_50 : f32 to vector<8x1xf32>
    %152 = arith.addf %150, %151 : vector<8x1xf32>
    %153 = math.rsqrt %152 : vector<8x1xf32>
    %154 = vector.broadcast %153 : vector<8x1xf32> to vector<8x32xf32>
    %155 = arith.mulf %145, %154 : vector<8x32xf32>
    %156 = vector.broadcast %9 : vector<1x32xf32> to vector<8x32xf32>
    %157 = arith.mulf %156, %155 : vector<8x32xf32>
    %158 = arith.truncf %157 : vector<8x32xf32> to vector<8x32xbf16>
    %c0_51 = arith.constant 0 : index
    %c0_52 = arith.constant 0 : index
    %159 = vector.load %arg5[%c0_51, %c0_52] : memref<32x128xbf16, #tpu.memory_space<vmem>>, vector<32x128xbf16>
    %cst_53 = arith.constant dense<0.000000e+00> : vector<8x128xf32>
    %160 = tpu.matmul %158, %159, %cst_53 {dimension_numbers = #tpu.dot_dimension_numbers<[1], [0], [0], [1], [0, 0, 1, 1], [], []>} : vector<8x32xbf16>, vector<32x128xbf16>, vector<8x128xf32> -> vector<8x128xf32>
    %161 = vector.extract_strided_slice %160 {offsets = [0, 0], sizes = [8, 64], strides = [1, 1]} : vector<8x128xf32> to vector<8x64xf32>
    %162 = vector.extract_strided_slice %160 {offsets = [0, 64], sizes = [8, 64], strides = [1, 1]} : vector<8x128xf32> to vector<8x64xf32>
    %163 = arith.negf %161 : vector<8x64xf32>
    %164 = math.exp %163 : vector<8x64xf32>
    %cst_54 = arith.constant 1.000000e+00 : f32
    %165 = vector.broadcast %cst_54 : f32 to vector<8x64xf32>
    %166 = arith.addf %165, %164 : vector<8x64xf32>
    %167 = arith.divf %165, %166 : vector<8x64xf32>
    %168 = arith.mulf %161, %167 : vector<8x64xf32>
    %169 = arith.mulf %168, %162 : vector<8x64xf32>
    %170 = arith.truncf %169 : vector<8x64xf32> to vector<8x64xbf16>
    %c0_55 = arith.constant 0 : index
    %c0_56 = arith.constant 0 : index
    %171 = vector.load %arg6[%c0_55, %c0_56] : memref<64x32xbf16, #tpu.memory_space<vmem>>, vector<64x32xbf16>
    %cst_57 = arith.constant dense<0.000000e+00> : vector<8x32xf32>
    %172 = tpu.matmul %170, %171, %cst_57 {dimension_numbers = #tpu.dot_dimension_numbers<[1], [0], [0], [1], [0, 0, 1, 1], [], []>} : vector<8x64xbf16>, vector<64x32xbf16>, vector<8x32xf32> -> vector<8x32xf32>
    %173 = arith.addf %145, %172 : vector<8x32xf32>
    %c0_58 = arith.constant 0 : index
    %c0_59 = arith.constant 0 : index
    %c0_60 = arith.constant 0 : index
    %174 = vector.load %arg9[%c0_58, %c0_59, %c0_60] : memref<1x8x32xf32, #tpu.memory_space<vmem>>, vector<1x8x32xf32>
    %175 = vector.shape_cast %174 : vector<1x8x32xf32> to vector<8x32xf32>
    %176 = vector.shape_cast %173 : vector<8x32xf32> to vector<1x8x32xf32>
    tpu.vector_store %arg9[%c0_58, %c0_59, %c0_60], %176 {strides = array<i32>} : memref<1x8x32xf32, #tpu.memory_space<vmem>>, vector<1x8x32xf32>,
    return
  }
  func.func @transform_0(%arg0: i32) -> (i32, i32, i32) {
    %c0_i32 = arith.constant 0 : i32
    %c0_i32_0 = arith.constant 0 : i32
    %c0_i32_1 = arith.constant 0 : i32
    return %arg0, %c0_i32, %c0_i32_0 : i32, i32, i32
  }
  func.func @transform_1(%arg0: i32) -> (i32, i32, i32) {
    %c0_i32 = arith.constant 0 : i32
    %c0_i32_0 = arith.constant 0 : i32
    %c0_i32_1 = arith.constant 0 : i32
    %c0_i32_2 = arith.constant 0 : i32
    return %c0_i32, %c0_i32_0, %c0_i32_1 : i32, i32, i32
  }
  func.func @transform_2(%arg0: i32) -> (i32, i32) {
    %c0_i32 = arith.constant 0 : i32
    %c0_i32_0 = arith.constant 0 : i32
    %c0_i32_1 = arith.constant 0 : i32
    return %c0_i32, %c0_i32_0 : i32, i32
  }
  func.func @transform_3(%arg0: i32) -> (i32, i32) {
    %c0_i32 = arith.constant 0 : i32
    %c0_i32_0 = arith.constant 0 : i32
    %c0_i32_1 = arith.constant 0 : i32
    return %c0_i32, %c0_i32_0 : i32, i32
  }
  func.func @transform_4(%arg0: i32) -> (i32, i32) {
    %c0_i32 = arith.constant 0 : i32
    %c0_i32_0 = arith.constant 0 : i32
    %c0_i32_1 = arith.constant 0 : i32
    return %c0_i32, %c0_i32_0 : i32, i32
  }
  func.func @transform_5(%arg0: i32) -> (i32, i32) {
    %c0_i32 = arith.constant 0 : i32
    %c0_i32_0 = arith.constant 0 : i32
    %c0_i32_1 = arith.constant 0 : i32
    return %c0_i32, %c0_i32_0 : i32, i32
  }
  func.func @transform_6(%arg0: i32) -> (i32, i32) {
    %c0_i32 = arith.constant 0 : i32
    %c0_i32_0 = arith.constant 0 : i32
    %c0_i32_1 = arith.constant 0 : i32
    return %c0_i32, %c0_i32_0 : i32, i32
  }
  func.func @transform_7(%arg0: i32) -> (i32, i32) {
    %c0_i32 = arith.constant 0 : i32
    %c0_i32_0 = arith.constant 0 : i32
    %c0_i32_1 = arith.constant 0 : i32
    return %c0_i32, %c0_i32_0 : i32, i32
  }
  func.func @transform_8(%arg0: i32) -> (i32, i32, i32) {
    %c0_i32 = arith.constant 0 : i32
    %c0_i32_0 = arith.constant 0 : i32
    %c0_i32_1 = arith.constant 0 : i32
    return %arg0, %c0_i32, %c0_i32_0 : i32, i32, i32
  }
}

module attributes {stable_mosaic.version = 11 : i64} {
  func.func @llama_layer_kernel(%arg0: i32, %arg1: memref<1x8x32xf32, #tpu.memory_space<vmem>>, %arg2: memref<3x8x32xbf16, #tpu.memory_space<vmem>>, %arg3: memref<32x96xbf16, #tpu.memory_space<vmem>>, %arg4: memref<32x32xbf16, #tpu.memory_space<vmem>>, %arg5: memref<32x128xbf16, #tpu.memory_space<vmem>>, %arg6: memref<64x32xbf16, #tpu.memory_space<vmem>>, %arg7: memref<1x32xf32, #tpu.memory_space<vmem>>, %arg8: memref<1x32xf32, #tpu.memory_space<vmem>>, %arg9: memref<1x8x32xf32, #tpu.memory_space<vmem>>, %arg10: memref<8x32xbf16, #tpu.memory_space<vmem>>) attributes {dimension_semantics = [#tpu.dimension_semantics<parallel>], iteration_bounds = array<i64: 2>, scalar_prefetch = 0 : i64, scratch_operands = 1 : i64, tpu.core_type = #tpu.core_type<tc>, window_params = [{transform_indices = @transform_0, window_bounds = array<i64: 1, 8, 32>}, {pipeline_mode = #tpu.pipeline_mode<synchronous>, transform_indices = @transform_1, window_bounds = array<i64: 3, 8, 32>}, {pipeline_mode = #tpu.pipeline_mode<synchronous>, transform_indices = @transform_2, window_bounds = array<i64: 32, 96>}, {pipeline_mode = #tpu.pipeline_mode<synchronous>, transform_indices = @transform_3, window_bounds = array<i64: 32, 32>}, {pipeline_mode = #tpu.pipeline_mode<synchronous>, transform_indices = @transform_4, window_bounds = array<i64: 32, 128>}, {pipeline_mode = #tpu.pipeline_mode<synchronous>, transform_indices = @transform_5, window_bounds = array<i64: 64, 32>}, {pipeline_mode = #tpu.pipeline_mode<synchronous>, transform_indices = @transform_6, window_bounds = array<i64: 1, 32>}, {pipeline_mode = #tpu.pipeline_mode<synchronous>, transform_indices = @transform_7, window_bounds = array<i64: 1, 32>}, {transform_indices = @transform_8, window_bounds = array<i64: 1, 8, 32>}]} {
    %c0 = arith.constant 0 : index
    %c0_0 = arith.constant 0 : index
    %c0_1 = arith.constant 0 : index
    %0 = vector.load %arg1[%c0, %c0_0, %c0_1] : memref<1x8x32xf32, #tpu.memory_space<vmem>>, vector<1x8x32xf32>
    %1 = vector.shape_cast %0 : vector<1x8x32xf32> to vector<8x32xf32>
    %c0_2 = arith.constant 0 : index
    %c0_3 = arith.constant 0 : index
    %c0_4 = arith.constant 0 : index
    %2 = vector.load %arg2[%c0_2, %c0_3, %c0_4] : memref<3x8x32xbf16, #tpu.memory_space<vmem>>, vector<1x8x32xbf16>
    %3 = vector.shape_cast %2 : vector<1x8x32xbf16> to vector<8x32xbf16>
    %c1 = arith.constant 1 : index
    %c0_5 = arith.constant 0 : index
    %c0_6 = arith.constant 0 : index
    %4 = vector.load %arg2[%c1, %c0_5, %c0_6] : memref<3x8x32xbf16, #tpu.memory_space<vmem>>, vector<1x8x32xbf16>
    %5 = vector.shape_cast %4 : vector<1x8x32xbf16> to vector<8x32xbf16>
    %c2 = arith.constant 2 : index
    %c0_7 = arith.constant 0 : index
    %c0_8 = arith.constant 0 : index
    %6 = vector.load %arg2[%c2, %c0_7, %c0_8] : memref<3x8x32xbf16, #tpu.memory_space<vmem>>, vector<1x8x32xbf16>
    %7 = vector.shape_cast %6 : vector<1x8x32xbf16> to vector<8x32xbf16>
    %c0_9 = arith.constant 0 : index
    %c0_10 = arith.constant 0 : index
    %8 = vector.load %arg7[%c0_9, %c0_10] : memref<1x32xf32, #tpu.memory_space<vmem>>, vector<1x32xf32>
    %c0_11 = arith.constant 0 : index
    %c0_12 = arith.constant 0 : index
    %9 = vector.load %arg8[%c0_11, %c0_12] : memref<1x32xf32, #tpu.memory_space<vmem>>, vector<1x32xf32>
    %10 = arith.mulf %1, %1 : vector<8x32xf32>
    %cst = arith.constant dense<0.000000e+00> : vector<8xf32>
    %11 = vector.multi_reduction <add>, %10, %cst [1] : vector<8x32xf32> to vector<8xf32>
    %12 = vector.shape_cast %11 : vector<8xf32> to vector<8x1xf32>
    %cst_13 = arith.constant 3.200000e+01 : f32
    %13 = vector.broadcast %cst_13 : f32 to vector<8x1xf32>
    %14 = arith.divf %12, %13 : vector<8x1xf32>
    %cst_14 = arith.constant 9.99999997E-7 : f32
    %15 = vector.broadcast %cst_14 : f32 to vector<8x1xf32>
    %16 = arith.addf %14, %15 : vector<8x1xf32>
    %17 = math.rsqrt %16 : vector<8x1xf32>
    %18 = vector.broadcast %17 : vector<8x1xf32> to vector<8x32xf32>
    %19 = arith.mulf %1, %18 : vector<8x32xf32>
    %20 = vector.broadcast %8 : vector<1x32xf32> to vector<8x32xf32>
    %21 = arith.mulf %20, %19 : vector<8x32xf32>
    %22 = arith.truncf %21 : vector<8x32xf32> to vector<8x32xbf16>
    %c0_15 = arith.constant 0 : index
    %c0_16 = arith.constant 0 : index
    %23 = vector.load %arg3[%c0_15, %c0_16] : memref<32x96xbf16, #tpu.memory_space<vmem>>, vector<32x96xbf16>
    %cst_17 = arith.constant dense<0.000000e+00> : vector<8x96xf32>
    %24 = tpu.matmul %22, %23, %cst_17 {dimension_numbers = #tpu.dot_dimension_numbers<[1], [0], [0], [1], [0, 0, 1, 1], [], []>} : vector<8x32xbf16>, vector<32x96xbf16>, vector<8x96xf32> -> vector<8x96xf32>
    %25 = vector.extract_strided_slice %24 {offsets = [0, 0], sizes = [8, 32], strides = [1, 1]} : vector<8x96xf32> to vector<8x32xf32>
    %26 = vector.extract_strided_slice %24 {offsets = [0, 32], sizes = [8, 32], strides = [1, 1]} : vector<8x96xf32> to vector<8x32xf32>
    %27 = vector.extract_strided_slice %24 {offsets = [0, 64], sizes = [8, 32], strides = [1, 1]} : vector<8x96xf32> to vector<8x32xf32>
    %28 = arith.truncf %27 : vector<8x32xf32> to vector<8x32xbf16>
    %29 = arith.extf %3 : vector<8x32xbf16> to vector<8x32xf32>
    %30 = arith.mulf %25, %29 : vector<8x32xf32>
    %31 = vector.extract_strided_slice %25 {offsets = [0, 4], sizes = [8, 28], strides = [1, 1]} : vector<8x32xf32> to vector<8x28xf32>
    %32 = vector.extract_strided_slice %25 {offsets = [0, 0], sizes = [8, 4], strides = [1, 1]} : vector<8x32xf32> to vector<8x4xf32>
    %33 = tpu.concatenate %31, %32 in 1 : vector<8x28xf32>, vector<8x4xf32> -> vector<8x32xf32>
    %34 = arith.extf %5 : vector<8x32xbf16> to vector<8x32xf32>
    %35 = arith.mulf %33, %34 : vector<8x32xf32>
    %36 = arith.addf %30, %35 : vector<8x32xf32>
    %37 = vector.extract_strided_slice %25 {offsets = [0, 28], sizes = [8, 4], strides = [1, 1]} : vector<8x32xf32> to vector<8x4xf32>
    %38 = vector.extract_strided_slice %25 {offsets = [0, 0], sizes = [8, 28], strides = [1, 1]} : vector<8x32xf32> to vector<8x28xf32>
    %39 = tpu.concatenate %37, %38 in 1 : vector<8x4xf32>, vector<8x28xf32> -> vector<8x32xf32>
    %40 = arith.extf %7 : vector<8x32xbf16> to vector<8x32xf32>
    %41 = arith.mulf %39, %40 : vector<8x32xf32>
    %42 = arith.addf %36, %41 : vector<8x32xf32>
    %43 = arith.extf %3 : vector<8x32xbf16> to vector<8x32xf32>
    %44 = arith.mulf %26, %43 : vector<8x32xf32>
    %45 = vector.extract_strided_slice %26 {offsets = [0, 4], sizes = [8, 28], strides = [1, 1]} : vector<8x32xf32> to vector<8x28xf32>
    %46 = vector.extract_strided_slice %26 {offsets = [0, 0], sizes = [8, 4], strides = [1, 1]} : vector<8x32xf32> to vector<8x4xf32>
    %47 = tpu.concatenate %45, %46 in 1 : vector<8x28xf32>, vector<8x4xf32> -> vector<8x32xf32>
    %48 = arith.extf %5 : vector<8x32xbf16> to vector<8x32xf32>
    %49 = arith.mulf %47, %48 : vector<8x32xf32>
    %50 = arith.addf %44, %49 : vector<8x32xf32>
    %51 = vector.extract_strided_slice %26 {offsets = [0, 28], sizes = [8, 4], strides = [1, 1]} : vector<8x32xf32> to vector<8x4xf32>
    %52 = vector.extract_strided_slice %26 {offsets = [0, 0], sizes = [8, 28], strides = [1, 1]} : vector<8x32xf32> to vector<8x28xf32>
    %53 = tpu.concatenate %51, %52 in 1 : vector<8x4xf32>, vector<8x28xf32> -> vector<8x32xf32>
    %54 = arith.extf %7 : vector<8x32xbf16> to vector<8x32xf32>
    %55 = arith.mulf %53, %54 : vector<8x32xf32>
    %56 = arith.addf %50, %55 : vector<8x32xf32>
    %57 = arith.truncf %42 : vector<8x32xf32> to vector<8x32xbf16>
    %58 = arith.truncf %56 : vector<8x32xf32> to vector<8x32xbf16>
    %59 = tpu.iota {dimensions = array<i32: 0>} : vector<8x8xi32>
    %60 = tpu.iota {dimensions = array<i32: 1>} : vector<8x8xi32>
    %61 = arith.cmpi sle, %60, %59 : vector<8x8xi32>
    %62 = vector.extract_strided_slice %57 {offsets = [0, 0], sizes = [8, 8], strides = [1, 1]} : vector<8x32xbf16> to vector<8x8xbf16>
    %63 = vector.extract_strided_slice %58 {offsets = [0, 0], sizes = [8, 8], strides = [1, 1]} : vector<8x32xbf16> to vector<8x8xbf16>
    %cst_18 = arith.constant dense<0.000000e+00> : vector<8x8xf32>
    %64 = tpu.matmul %62, %63, %cst_18 {dimension_numbers = #tpu.dot_dimension_numbers<[1], [1], [0], [0], [0, 0, 1, 0], [], []>} : vector<8x8xbf16>, vector<8x8xbf16>, vector<8x8xf32> -> vector<8x8xf32>
    %cst_19 = arith.constant -1.000000e+30 : f32
    %65 = vector.broadcast %cst_19 : f32 to vector<8x8xf32>
    %66 = arith.select %61, %64, %65 : vector<8x8xi1>, vector<8x8xf32>
    %cst_20 = arith.constant dense<0xFF800000> : vector<8xf32>
    %67 = vector.multi_reduction <maximumf>, %66, %cst_20 [1] : vector<8x8xf32> to vector<8xf32>
    %68 = vector.shape_cast %67 : vector<8xf32> to vector<8x1xf32>
    %69 = vector.broadcast %68 : vector<8x1xf32> to vector<8x8xf32>
    %70 = arith.subf %66, %69 : vector<8x8xf32>
    %71 = math.exp %70 : vector<8x8xf32>
    %cst_21 = arith.constant dense<0.000000e+00> : vector<8xf32>
    %72 = vector.multi_reduction <add>, %71, %cst_21 [1] : vector<8x8xf32> to vector<8xf32>
    %73 = vector.shape_cast %72 : vector<8xf32> to vector<8x1xf32>
    %74 = tpu.reciprocal %73 {approx = true} : vector<8x1xf32> -> vector<8x1xf32>
    %75 = vector.broadcast %74 : vector<8x1xf32> to vector<8x8xf32>
    %76 = arith.mulf %71, %75 : vector<8x8xf32>
    %77 = arith.truncf %76 : vector<8x8xf32> to vector<8x8xbf16>
    %78 = vector.extract_strided_slice %28 {offsets = [0, 0], sizes = [8, 8], strides = [1, 1]} : vector<8x32xbf16> to vector<8x8xbf16>
    %cst_22 = arith.constant dense<0.000000e+00> : vector<8x8xf32>
    %79 = tpu.matmul %77, %78, %cst_22 {dimension_numbers = #tpu.dot_dimension_numbers<[1], [0], [0], [1], [0, 0, 1, 1], [], []>} : vector<8x8xbf16>, vector<8x8xbf16>, vector<8x8xf32> -> vector<8x8xf32>
    %80 = arith.truncf %79 : vector<8x8xf32> to vector<8x8xbf16>
    %c0_23 = arith.constant 0 : index
    %c0_24 = arith.constant 0 : index
    %81 = vector.load %arg10[%c0_23, %c0_24] : memref<8x32xbf16, #tpu.memory_space<vmem>>, vector<8x8xbf16>
    tpu.vector_store %arg10[%c0_23, %c0_24], %80 {strides = array<i32>} : memref<8x32xbf16, #tpu.memory_space<vmem>>, vector<8x8xbf16>,
    %82 = vector.extract_strided_slice %57 {offsets = [0, 8], sizes = [8, 8], strides = [1, 1]} : vector<8x32xbf16> to vector<8x8xbf16>
    %83 = vector.extract_strided_slice %58 {offsets = [0, 8], sizes = [8, 8], strides = [1, 1]} : vector<8x32xbf16> to vector<8x8xbf16>
    %cst_25 = arith.constant dense<0.000000e+00> : vector<8x8xf32>
    %84 = tpu.matmul %82, %83, %cst_25 {dimension_numbers = #tpu.dot_dimension_numbers<[1], [1], [0], [0], [0, 0, 1, 0], [], []>} : vector<8x8xbf16>, vector<8x8xbf16>, vector<8x8xf32> -> vector<8x8xf32>
    %cst_26 = arith.constant -1.000000e+30 : f32
    %85 = vector.broadcast %cst_26 : f32 to vector<8x8xf32>
    %86 = arith.select %61, %84, %85 : vector<8x8xi1>, vector<8x8xf32>
    %cst_27 = arith.constant dense<0xFF800000> : vector<8xf32>
    %87 = vector.multi_reduction <maximumf>, %86, %cst_27 [1] : vector<8x8xf32> to vector<8xf32>
    %88 = vector.shape_cast %87 : vector<8xf32> to vector<8x1xf32>
    %89 = vector.broadcast %88 : vector<8x1xf32> to vector<8x8xf32>
    %90 = arith.subf %86, %89 : vector<8x8xf32>
    %91 = math.exp %90 : vector<8x8xf32>
    %cst_28 = arith.constant dense<0.000000e+00> : vector<8xf32>
    %92 = vector.multi_reduction <add>, %91, %cst_28 [1] : vector<8x8xf32> to vector<8xf32>
    %93 = vector.shape_cast %92 : vector<8xf32> to vector<8x1xf32>
    %94 = tpu.reciprocal %93 {approx = true} : vector<8x1xf32> -> vector<8x1xf32>
    %95 = vector.broadcast %94 : vector<8x1xf32> to vector<8x8xf32>
    %96 = arith.mulf %91, %95 : vector<8x8xf32>
    %97 = arith.truncf %96 : vector<8x8xf32> to vector<8x8xbf16>
    %98 = vector.extract_strided_slice %28 {offsets = [0, 8], sizes = [8, 8], strides = [1, 1]} : vector<8x32xbf16> to vector<8x8xbf16>
    %cst_29 = arith.constant dense<0.000000e+00> : vector<8x8xf32>
    %99 = tpu.matmul %97, %98, %cst_29 {dimension_numbers = #tpu.dot_dimension_numbers<[1], [0], [0], [1], [0, 0, 1, 1], [], []>} : vector<8x8xbf16>, vector<8x8xbf16>, vector<8x8xf32> -> vector<8x8xf32>
    %100 = arith.truncf %99 : vector<8x8xf32> to vector<8x8xbf16>
    %c0_30 = arith.constant 0 : index
    %c8 = arith.constant 8 : index
    %101 = vector.load %arg10[%c0_30, %c8] : memref<8x32xbf16, #tpu.memory_space<vmem>>, vector<8x8xbf16>
    tpu.vector_store %arg10[%c0_30, %c8], %100 {strides = array<i32>} : memref<8x32xbf16, #tpu.memory_space<vmem>>, vector<8x8xbf16>,
    %102 = vector.extract_strided_slice %57 {offsets = [0, 16], sizes = [8, 8], strides = [1, 1]} : vector<8x32xbf16> to vector<8x8xbf16>
    %103 = vector.extract_strided_slice %58 {offsets = [0, 16], sizes = [8, 8], strides = [1, 1]} : vector<8x32xbf16> to vector<8x8xbf16>
    %cst_31 = arith.constant dense<0.000000e+00> : vector<8x8xf32>
    %104 = tpu.matmul %102, %103, %cst_31 {dimension_numbers = #tpu.dot_dimension_numbers<[1], [1], [0], [0], [0, 0, 1, 0], [], []>} : vector<8x8xbf16>, vector<8x8xbf16>, vector<8x8xf32> -> vector<8x8xf32>
    %cst_32 = arith.constant -1.000000e+30 : f32
    %105 = vector.broadcast %cst_32 : f32 to vector<8x8xf32>
    %106 = arith.select %61, %104, %105 : vector<8x8xi1>, vector<8x8xf32>
    %cst_33 = arith.constant dense<0xFF800000> : vector<8xf32>
    %107 = vector.multi_reduction <maximumf>, %106, %cst_33 [1] : vector<8x8xf32> to vector<8xf32>
    %108 = vector.shape_cast %107 : vector<8xf32> to vector<8x1xf32>
    %109 = vector.broadcast %108 : vector<8x1xf32> to vector<8x8xf32>
    %110 = arith.subf %106, %109 : vector<8x8xf32>
    %111 = math.exp %110 : vector<8x8xf32>
    %cst_34 = arith.constant dense<0.000000e+00> : vector<8xf32>
    %112 = vector.multi_reduction <add>, %111, %cst_34 [1] : vector<8x8xf32> to vector<8xf32>
    %113 = vector.shape_cast %112 : vector<8xf32> to vector<8x1xf32>
    %114 = tpu.reciprocal %113 {approx = true} : vector<8x1xf32> -> vector<8x1xf32>
    %115 = vector.broadcast %114 : vector<8x1xf32> to vector<8x8xf32>
    %116 = arith.mulf %111, %115 : vector<8x8xf32>
    %117 = arith.truncf %116 : vector<8x8xf32> to vector<8x8xbf16>
    %118 = vector.extract_strided_slice %28 {offsets = [0, 16], sizes = [8, 8], strides = [1, 1]} : vector<8x32xbf16> to vector<8x8xbf16>
    %cst_35 = arith.constant dense<0.000000e+00> : vector<8x8xf32>
    %119 = tpu.matmul %117, %118, %cst_35 {dimension_numbers = #tpu.dot_dimension_numbers<[1], [0], [0], [1], [0, 0, 1, 1], [], []>} : vector<8x8xbf16>, vector<8x8xbf16>, vector<8x8xf32> -> vector<8x8xf32>
    %120 = arith.truncf %119 : vector<8x8xf32> to vector<8x8xbf16>
    %c0_36 = arith.constant 0 : index
    %c16 = arith.constant 16 : index
    %121 = vector.load %arg10[%c0_36, %c16] : memref<8x32xbf16, #tpu.memory_space<vmem>>, vector<8x8xbf16>
    tpu.vector_store %arg10[%c0_36, %c16], %120 {strides = array<i32>} : memref<8x32xbf16, #tpu.memory_space<vmem>>, vector<8x8xbf16>,
    %122 = vector.extract_strided_slice %57 {offsets = [0, 24], sizes = [8, 8], strides = [1, 1]} : vector<8x32xbf16> to vector<8x8xbf16>
    %123 = vector.extract_strided_slice %58 {offsets = [0, 24], sizes = [8, 8], strides = [1, 1]} : vector<8x32xbf16> to vector<8x8xbf16>
    %cst_37 = arith.constant dense<0.000000e+00> : vector<8x8xf32>
    %124 = tpu.matmul %122, %123, %cst_37 {dimension_numbers = #tpu.dot_dimension_numbers<[1], [1], [0], [0], [0, 0, 1, 0], [], []>} : vector<8x8xbf16>, vector<8x8xbf16>, vector<8x8xf32> -> vector<8x8xf32>
    %cst_38 = arith.constant -1.000000e+30 : f32
    %125 = vector.broadcast %cst_38 : f32 to vector<8x8xf32>
    %126 = arith.select %61, %124, %125 : vector<8x8xi1>, vector<8x8xf32>
    %cst_39 = arith.constant dense<0xFF800000> : vector<8xf32>
    %127 = vector.multi_reduction <maximumf>, %126, %cst_39 [1] : vector<8x8xf32> to vector<8xf32>
    %128 = vector.shape_cast %127 : vector<8xf32> to vector<8x1xf32>
    %129 = vector.broadcast %128 : vector<8x1xf32> to vector<8x8xf32>
    %130 = arith.subf %126, %129 : vector<8x8xf32>
    %131 = math.exp %130 : vector<8x8xf32>
    %cst_40 = arith.constant dense<0.000000e+00> : vector<8xf32>
    %132 = vector.multi_reduction <add>, %131, %cst_40 [1] : vector<8x8xf32> to vector<8xf32>
    %133 = vector.shape_cast %132 : vector<8xf32> to vector<8x1xf32>
    %134 = tpu.reciprocal %133 {approx = true} : vector<8x1xf32> -> vector<8x1xf32>
    %135 = vector.broadcast %134 : vector<8x1xf32> to vector<8x8xf32>
    %136 = arith.mulf %131, %135 : vector<8x8xf32>
    %137 = arith.truncf %136 : vector<8x8xf32> to vector<8x8xbf16>
    %138 = vector.extract_strided_slice %28 {offsets = [0, 24], sizes = [8, 8], strides = [1, 1]} : vector<8x32xbf16> to vector<8x8xbf16>
    %cst_41 = arith.constant dense<0.000000e+00> : vector<8x8xf32>
    %139 = tpu.matmul %137, %138, %cst_41 {dimension_numbers = #tpu.dot_dimension_numbers<[1], [0], [0], [1], [0, 0, 1, 1], [], []>} : vector<8x8xbf16>, vector<8x8xbf16>, vector<8x8xf32> -> vector<8x8xf32>
    %140 = arith.truncf %139 : vector<8x8xf32> to vector<8x8xbf16>
    %c0_42 = arith.constant 0 : index
    %c24 = arith.constant 24 : index
    %141 = vector.load %arg10[%c0_42, %c24] : memref<8x32xbf16, #tpu.memory_space<vmem>>, vector<8x8xbf16>
    tpu.vector_store %arg10[%c0_42, %c24], %140 {strides = array<i32>} : memref<8x32xbf16, #tpu.memory_space<vmem>>, vector<8x8xbf16>,
    %c0_43 = arith.constant 0 : index
    %c0_44 = arith.constant 0 : index
    %142 = vector.load %arg10[%c0_43, %c0_44] : memref<8x32xbf16, #tpu.memory_space<vmem>>, vector<8x32xbf16>
    %c0_45 = arith.constant 0 : index
    %c0_46 = arith.constant 0 : index
    %143 = vector.load %arg4[%c0_45, %c0_46] : memref<32x32xbf16, #tpu.memory_space<vmem>>, vector<32x32xbf16>
    %cst_47 = arith.constant dense<0.000000e+00> : vector<8x32xf32>
    %144 = tpu.matmul %142, %143, %cst_47 {dimension_numbers = #tpu.dot_dimension_numbers<[1], [0], [0], [1], [0, 0, 1, 1], [], []>} : vector<8x32xbf16>, vector<32x32xbf16>, vector<8x32xf32> -> vector<8x32xf32>
    %145 = arith.addf %1, %144 : vector<8x32xf32>
    %146 = arith.mulf %145, %145 : vector<8x32xf32>
    %cst_48 = arith.constant dense<0.000000e+00> : vector<8xf32>
    %147 = vector.multi_reduction <add>, %146, %cst_48 [1] : vector<8x32xf32> to vector<8xf32>
    %148 = vector.shape_cast %147 : vector<8xf32> to vector<8x1xf32>
    %cst_49 = arith.constant 3.200000e+01 : f32
    %149 = vector.broadcast %cst_49 : f32 to vector<8x1xf32>
    %150 = arith.divf %148, %149 : vector<8x1xf32>
    %cst_50 = arith.constant 9.99999997E-7 : f32
    %151 = vector.broadcast %cst_50 : f32 to vector<8x1xf32>
    %152 = arith.addf %150, %151 : vector<8x1xf32>
    %153 = math.rsqrt %152 : vector<8x1xf32>
    %154 = vector.broadcast %153 : vector<8x1xf32> to vector<8x32xf32>
    %155 = arith.mulf %145, %154 : vector<8x32xf32>
    %156 = vector.broadcast %9 : vector<1x32xf32> to vector<8x32xf32>
    %157 = arith.mulf %156, %155 : vector<8x32xf32>
    %158 = arith.truncf %157 : vector<8x32xf32> to vector<8x32xbf16>
    %c0_51 = arith.constant 0 : index
    %c0_52 = arith.constant 0 : index
    %159 = vector.load %arg5[%c0_51, %c0_52] : memref<32x128xbf16, #tpu.memory_space<vmem>>, vector<32x128xbf16>
    %cst_53 = arith.constant dense<0.000000e+00> : vector<8x128xf32>
    %160 = tpu.matmul %158, %159, %cst_53 {dimension_numbers = #tpu.dot_dimension_numbers<[1], [0], [0], [1], [0, 0, 1, 1], [], []>} : vector<8x32xbf16>, vector<32x128xbf16>, vector<8x128xf32> -> vector<8x128xf32>
    %161 = vector.extract_strided_slice %160 {offsets = [0, 0], sizes = [8, 64], strides = [1, 1]} : vector<8x128xf32> to vector<8x64xf32>
    %162 = vector.extract_strided_slice %160 {offsets = [0, 64], sizes = [8, 64], strides = [1, 1]} : vector<8x128xf32> to vector<8x64xf32>
    %163 = arith.negf %161 : vector<8x64xf32>
    %164 = math.exp %163 : vector<8x64xf32>
    %cst_54 = arith.constant 1.000000e+00 : f32
    %165 = vector.broadcast %cst_54 : f32 to vector<8x64xf32>
    %166 = arith.addf %165, %164 : vector<8x64xf32>
    %167 = arith.divf %165, %166 : vector<8x64xf32>
    %168 = arith.mulf %161, %167 : vector<8x64xf32>
    %169 = arith.mulf %168, %162 : vector<8x64xf32>
    %170 = arith.truncf %169 : vector<8x64xf32> to vector<8x64xbf16>
    %c0_55 = arith.constant 0 : index
    %c0_56 = arith.constant 0 : index
    %171 = vector.load %arg6[%c0_55, %c0_56] : memref<64x32xbf16, #tpu.memory_space<vmem>>, vector<64x32xbf16>
    %cst_57 = arith.constant dense<0.000000e+00> : vector<8x32xf32>
    %172 = tpu.matmul %170, %171, %cst_57 {dimension_numbers = #tpu.dot_dimension_numbers<[1], [0], [0], [1], [0, 0, 1, 1], [], []>} : vector<8x64xbf16>, vector<64x32xbf16>, vector<8x32xf32> -> vector<8x32xf32>
    %173 = arith.addf %145, %172 : vector<8x32xf32>
    %c0_58 = arith.constant 0 : index
    %c0_59 = arith.constant 0 : index
    %c0_60 = arith.constant 0 : index
    %174 = vector.load %arg9[%c0_58, %c0_59, %c0_60] : memref<1x8x32xf32, #tpu.memory_space<vmem>>, vector<1x8x32xf32>
    %175 = vector.shape_cast %174 : vector<1x8x32xf32> to vector<8x32xf32>
    %176 = vector.shape_cast %173 : vector<8x32xf32> to vector<1x8x32xf32>
    tpu.vector_store %arg9[%c0_58, %c0_59, %c0_60], %176 {strides = array<i32>} : memref<1x8x32xf32, #tpu.memory_space<vmem>>, vector<1x8x32xf32>,
    return
  }
  func.func @transform_0(%arg0: i32) -> (i32, i32, i32) {
    %c0_i32 = arith.constant 0 : i32
    %c0_i32_0 = arith.constant 0 : i32
    %c0_i32_1 = arith.constant 0 : i32
    return %arg0, %c0_i32, %c0_i32_0 : i32, i32, i32
  }
  func.func @transform_1(%arg0: i32) -> (i32, i32, i32) {
    %c0_i32 = arith.constant 0 : i32
    %c0_i32_0 = arith.constant 0 : i32
    %c0_i32_1 = arith.constant 0 : i32
    %c0_i32_2 = arith.constant 0 : i32
    return %c0_i32, %c0_i32_0, %c0_i32_1 : i32, i32, i32
  }
  func.func @transform_2(%arg0: i32) -> (i32, i32) {
    %c0_i32 = arith.constant 0 : i32
    %c0_i32_0 = arith.constant 0 : i32
    %c0_i32_1 = arith.constant 0 : i32
    return %c0_i32, %c0_i32_0 : i32, i32
  }
  func.func @transform_3(%arg0: i32) -> (i32, i32) {
    %c0_i32 = arith.constant 0 : i32
    %c0_i32_0 = arith.constant 0 : i32
    %c0_i32_1 = arith.constant 0 : i32
    return %c0_i32, %c0_i32_0 : i32, i32
  }
  func.func @transform_4(%arg0: i32) -> (i32, i32) {
    %c0_i32 = arith.constant 0 : i32
    %c0_i32_0 = arith.constant 0 : i32
    %c0_i32_1 = arith.constant 0 : i32
    return %c0_i32, %c0_i32_0 : i32, i32
  }
  func.func @transform_5(%arg0: i32) -> (i32, i32) {
    %c0_i32 = arith.constant 0 : i32
    %c0_i32_0 = arith.constant 0 : i32
    %c0_i32_1 = arith.constant 0 : i32
    return %c0_i32, %c0_i32_0 : i32, i32
  }
  func.func @transform_6(%arg0: i32) -> (i32, i32) {
    %c0_i32 = arith.constant 0 : i32
    %c0_i32_0 = arith.constant 0 : i32
    %c0_i32_1 = arith.constant 0 : i32
    return %c0_i32, %c0_i32_0 : i32, i32
  }
  func.func @transform_7(%arg0: i32) -> (i32, i32) {
    %c0_i32 = arith.constant 0 : i32
    %c0_i32_0 = arith.constant 0 : i32
    %c0_i32_1 = arith.constant 0 : i32
    return %c0_i32, %c0_i32_0 : i32, i32
  }
  func.func @transform_8(%arg0: i32) -> (i32, i32, i32) {
    %c0_i32 = arith.constant 0 : i32
    %c0_i32_0 = arith.constant 0 : i32
    %c0_i32_1 = arith.constant 0 : i32
    return %arg0, %c0_i32, %c0_i32_0 : i32, i32, i32
  }
}

</mosaic_0001>

<llo_original>
// kernel: tpu_custom_call.1
$region0: #{tpu_custom_call.1}
  #allocation0 [shape = 'u32[]', space=smem, size = 0x4, offset = 0x4, fixed_abs, tag = 'smem constant byte address 0x4 - core index']
  #allocation1 [shape = 'u32[72,128]{1,0:T(1,128)}', space=vmem, size = 0x9000, scoped, tag = 'internal scratch']
  #allocation2 [shape = 'bf16[8,32]{1,0:T(8,128)(2,1)}', space=vmem, size = 0x800, scoped, tag = 'scratch operand']
  %s0 = inlined_call_operand.vmem [shape: f32[2,8,32], index: 0, kind: input, shape index: {}]
  %s1 = inlined_call_operand.hbm [shape: bf16[3,8,32], index: 1, kind: input, shape index: {}]
  %s2 = inlined_call_operand.vmem [shape: bf16[32,96], index: 2, kind: input, shape index: {}]
  %s3 = inlined_call_operand.vmem [shape: bf16[32,32], index: 3, kind: input, shape index: {}]
  %s4 = inlined_call_operand.hbm [shape: bf16[32,128], index: 4, kind: input, shape index: {}]
  %s5 = inlined_call_operand.vmem [shape: bf16[64,32], index: 5, kind: input, shape index: {}]
  %s6 = inlined_call_operand.vmem [shape: f32[1,32], index: 6, kind: input, shape index: {}]
  %s7 = inlined_call_operand.vmem [shape: f32[1,32], index: 7, kind: input, shape index: {}]
  %s8 = inlined_call_operand.hbm [shape: f32[2,8,32], index: 8, kind: output, shape index: {}]
  %s9 = sld [smem:[#allocation0]]
  $region73: #{tpu_custom_call.1} parent=0
    _
  %s11 = ssub.s32 1, %s9
  %s12 = scalar_select 0, %s11, %s9
  $region1: #{tpu_custom_call.1} parent=0
    #allocation3 [shape = 'u8[6144]{0}', space=vmem, size = 0x1800, scoped, tag = 'input window, operand 1, single buffered']
    #allocation4 [shape = 's32[2]{0}', space=sflag, size = 0x8, scoped, tag = 'scoped memory for tpu_custom_call.1']
    #allocation5 [shape = 's32[2]{0}', space=sflag, size = 0x8, scoped, tag = 'scoped memory for tpu_custom_call.1']
    #allocation6 [shape = 'u8[8192]{0}', space=vmem, size = 0x2000, scoped, tag = 'input window, operand 4, single buffered']
    #allocation7 [shape = 's32[1]{0}', space=sflag, size = 0x4, scoped, tag = 'scoped memory for tpu_custom_call.1']
    #allocation8 [shape = 'u8[8192]{0}', space=vmem, size = 0x2000, scoped, tag = 'output window, operand 0']
    %13 = vsyncpa [#allocation4], 0
    %14 = vsyncpa [#allocation7], 0
    %15 = vsyncpa [#allocation5], 0
    %s16 = scalar_lea.sflag [#allocation5], 1
    %17 = vsyncpa %s16, 0
    loop: start=0, step=1, limit=4
    $region2: #{tpu_custom_call.1} parent=1 // loop_pre_header
      _
    $region3: #{tpu_custom_call.1} parent=1 // loop_header
      %s19 = sphi 0, %s23
      %p20 = scmp.ge.s32.totalorder %s19, 4
      %s29 = sphi 0, %s31
      %s32 = sphi 0, %s29
      %s33 = sphi 0, %s32
      %s49 = sphi 0, %s33
      %s53 = sphi 0, %s53
      %s55 = sphi 0, %s53
      %s56 = sphi 0, %s55
      %s70 = sphi 0, %s56
      %s74 = sphi 0, %s74
      %s76 = sphi 0, %s74
      %s77 = sphi 0, %s76
      %s91 = sphi 0, %s77
      %s95 = sphi 0, %s95
      %s97 = sphi 0, %s95
      %s98 = sphi 0, %s97
      %s112 = sphi 0, %s98
      %s116 = sphi 0, %s116
      %s118 = sphi 0, %s116
      %s119 = sphi 0, %s118
      %s133 = sphi 0, %s119
      %s137 = sphi 0, %s137
      %s139 = sphi 0, %s137
      %s140 = sphi 0, %s139
      %s154 = sphi 0, %s140
      %s158 = sphi 0, %s158
      %s160 = sphi 0, %s158
      %s161 = sphi 0, %s160
      %s175 = sphi 0, %s161
      %s179 = sphi 0, %s179
      %s181 = sphi 0, %s179
      %s182 = sphi 0, %s181
      %s196 = sphi 0, %s182
      %s202 = sphi 0, %s204
      %s205 = sphi 0, %s202
      %s206 = sphi 0, %s205
      %s222 = sphi 0, %s206
    $region4: #{tpu_custom_call.1} parent=1 // loop_header_branch
      %22 = sbr.rel (%p20) target = $region8
    $region5: #{tpu_custom_call.1} parent=1 // loop_body
      %s24 = ssub.s32 %s19, 1
      %s25 = ssub.s32 %s19, 2
      %s26 = sadd.s32 %s19, 1
      %s27 = ssub.s32 %s19, %s26
      %p28 = scmp.eq.s32.totalorder %s27, 0
      %s30 = sadd.s32 %s29, 1
      %s31 = scalar_select %p28, %s29, %s30
      %p34 = pneg %p28
      %p35 = scmp.eq.s32.totalorder %s19, 1
      %p36 = por %p34, %p35
      %p37 = scmp.ne.s32.totalorder %s29, %s32
      %p38 = scmp.eq.s32.totalorder %s19, 0
      %p39 = por %p37, %p38
      %p40 = scmp.ne.s32.totalorder %s29, %s32
      %p41 = scmp.eq.s32.totalorder %s24, 1
      %p42 = por %p40, %p41
      %p43 = scmp.ne.s32.totalorder %s32, %s33
      %p44 = scmp.eq.s32.totalorder %s24, 0
      %p45 = por %p43, %p44
      %p46 = scmp.ne.s32.totalorder %s32, %s33
      %p47 = scmp.eq.s32.totalorder %s25, 1
      %p48 = por %p46, %p47
      %p50 = scmp.ne.s32.totalorder %s33, %s49
      %p51 = scmp.eq.s32.totalorder %s25, 0
      %p52 = por %p50, %p51
      %s54 = sadd.s32 %s53, 1
      %p57 = scmp.eq.s32.totalorder %s19, 1
      %p58 = scmp.ne.s32.totalorder %s53, %s55
      %p59 = scmp.eq.s32.totalorder %s19, 0
      %p60 = por %p58, %p59
      %p61 = scmp.ne.s32.totalorder %s53, %s55
      %p62 = scmp.eq.s32.totalorder %s24, 1
      %p63 = por %p61, %p62
      %p64 = scmp.ne.s32.totalorder %s55, %s56
      %p65 = scmp.eq.s32.totalorder %s24, 0
      %p66 = por %p64, %p65
      %p67 = scmp.ne.s32.totalorder %s55, %s56
      %p68 = scmp.eq.s32.totalorder %s25, 1
      %p69 = por %p67, %p68
      %p71 = scmp.ne.s32.totalorder %s56, %s70
      %p72 = scmp.eq.s32.totalorder %s25, 0
      %p73 = por %p71, %p72
      %s75 = sadd.s32 %s74, 1
      %p78 = scmp.eq.s32.totalorder %s19, 1
      %p79 = scmp.ne.s32.totalorder %s74, %s76
      %p80 = scmp.eq.s32.totalorder %s19, 0
      %p81 = por %p79, %p80
      %p82 = scmp.ne.s32.totalorder %s74, %s76
      %p83 = scmp.eq.s32.totalorder %s24, 1
      %p84 = por %p82, %p83
      %p85 = scmp.ne.s32.totalorder %s76, %s77
      %p86 = scmp.eq.s32.totalorder %s24, 0
      %p87 = por %p85, %p86
      %p88 = scmp.ne.s32.totalorder %s76, %s77
      %p89 = scmp.eq.s32.totalorder %s25, 1
      %p90 = por %p88, %p89
      %p92 = scmp.ne.s32.totalorder %s77, %s91
      %p93 = scmp.eq.s32.totalorder %s25, 0
      %p94 = por %p92, %p93
      %s96 = sadd.s32 %s95, 1
      %p99 = scmp.eq.s32.totalorder %s19, 1
      %p100 = scmp.ne.s32.totalorder %s95, %s97
      %p101 = scmp.eq.s32.totalorder %s19, 0
      %p102 = por %p100, %p101
      %p103 = scmp.ne.s32.totalorder %s95, %s97
      %p104 = scmp.eq.s32.totalorder %s24, 1
      %p105 = por %p103, %p104
      %p106 = scmp.ne.s32.totalorder %s97, %s98
      %p107 = scmp.eq.s32.totalorder %s24, 0
      %p108 = por %p106, %p107
      %p109 = scmp.ne.s32.totalorder %s97, %s98
      %p110 = scmp.eq.s32.totalorder %s25, 1
      %p111 = por %p109, %p110
      %p113 = scmp.ne.s32.totalorder %s98, %s112
      %p114 = scmp.eq.s32.totalorder %s25, 0
      %p115 = por %p113, %p114
      %s117 = sadd.s32 %s116, 1
      %p120 = scmp.eq.s32.totalorder %s19, 1
      %p121 = scmp.ne.s32.totalorder %s116, %s118
      %p122 = scmp.eq.s32.totalorder %s19, 0
      %p123 = por %p121, %p122
      %p124 = scmp.ne.s32.totalorder %s116, %s118
      %p125 = scmp.eq.s32.totalorder %s24, 1
      %p126 = por %p124, %p125
      %p127 = scmp.ne.s32.totalorder %s118, %s119
      %p128 = scmp.eq.s32.totalorder %s24, 0
      %p129 = por %p127, %p128
      %p130 = scmp.ne.s32.totalorder %s118, %s119
      %p131 = scmp.eq.s32.totalorder %s25, 1
      %p132 = por %p130, %p131
      %p134 = scmp.ne.s32.totalorder %s119, %s133
      %p135 = scmp.eq.s32.totalorder %s25, 0
      %p136 = por %p134, %p135
      %s138 = sadd.s32 %s137, 1
      %p141 = scmp.eq.s32.totalorder %s19, 1
      %p142 = scmp.ne.s32.totalorder %s137, %s139
      %p143 = scmp.eq.s32.totalorder %s19, 0
      %p144 = por %p142, %p143
      %p145 = scmp.ne.s32.totalorder %s137, %s139
      %p146 = scmp.eq.s32.totalorder %s24, 1
      %p147 = por %p145, %p146
      %p148 = scmp.ne.s32.totalorder %s139, %s140
      %p149 = scmp.eq.s32.totalorder %s24, 0
      %p150 = por %p148, %p149
      %p151 = scmp.ne.s32.totalorder %s139, %s140
      %p152 = scmp.eq.s32.totalorder %s25, 1
      %p153 = por %p151, %p152
      %p155 = scmp.ne.s32.totalorder %s140, %s154
      %p156 = scmp.eq.s32.totalorder %s25, 0
      %p157 = por %p155, %p156
      %s159 = sadd.s32 %s158, 1
      %p162 = scmp.eq.s32.totalorder %s19, 1
      %p163 = scmp.ne.s32.totalorder %s158, %s160
      %p164 = scmp.eq.s32.totalorder %s19, 0
      %p165 = por %p163, %p164
      %p166 = scmp.ne.s32.totalorder %s158, %s160
      %p167 = scmp.eq.s32.totalorder %s24, 1
      %p168 = por %p166, %p167
      %p169 = scmp.ne.s32.totalorder %s160, %s161
      %p170 = scmp.eq.s32.totalorder %s24, 0
      %p171 = por %p169, %p170
      %p172 = scmp.ne.s32.totalorder %s160, %s161
      %p173 = scmp.eq.s32.totalorder %s25, 1
      %p174 = por %p172, %p173
      %p176 = scmp.ne.s32.totalorder %s161, %s175
      %p177 = scmp.eq.s32.totalorder %s25, 0
      %p178 = por %p176, %p177
      %s180 = sadd.s32 %s179, 1
      %p183 = scmp.eq.s32.totalorder %s19, 1
      %p184 = scmp.ne.s32.totalorder %s179, %s181
      %p185 = scmp.eq.s32.totalorder %s19, 0
      %p186 = por %p184, %p185
      %p187 = scmp.ne.s32.totalorder %s179, %s181
      %p188 = scmp.eq.s32.totalorder %s24, 1
      %p189 = por %p187, %p188
      %p190 = scmp.ne.s32.totalorder %s181, %s182
      %p191 = scmp.eq.s32.totalorder %s24, 0
      %p192 = por %p190, %p191
      %p193 = scmp.ne.s32.totalorder %s181, %s182
      %p194 = scmp.eq.s32.totalorder %s25, 1
      %p195 = por %p193, %p194
      %p197 = scmp.ne.s32.totalorder %s182, %s196
      %p198 = scmp.eq.s32.totalorder %s25, 0
      %p199 = por %p197, %p198
      %s200 = ssub.s32 %s19, %s26
      %p201 = scmp.eq.s32.totalorder %s200, 0
      %s203 = sadd.s32 %s202, 1
      %s204 = scalar_select %p201, %s202, %s203
      %p207 = pneg %p201
      %p208 = scmp.eq.s32.totalorder %s19, 1
      %p209 = por %p207, %p208
      %p210 = scmp.ne.s32.totalorder %s202, %s205
      %p211 = scmp.eq.s32.totalorder %s19, 0
      %p212 = por %p210, %p211
      %p213 = scmp.ne.s32.totalorder %s202, %s205
      %p214 = scmp.eq.s32.totalorder %s24, 1
      %p215 = por %p213, %p214
      %p216 = scmp.ne.s32.totalorder %s205, %s206
      %p217 = scmp.eq.s32.totalorder %s24, 0
      %p218 = por %p216, %p217
      %p219 = scmp.ne.s32.totalorder %s205, %s206
      %p220 = scmp.eq.s32.totalorder %s25, 1
      %p221 = por %p219, %p220
      %p223 = scmp.ne.s32.totalorder %s206, %s222
      %p224 = scmp.eq.s32.totalorder %s25, 0
      %p225 = por %p223, %p224
      %p226 = scmp.le.s32.totalorder 1, %s19
      %p227 = scmp.lt.s32.totalorder %s19, 3
      %p228 = pnand %p226, %p227
      %p229 = pneg %p228
      // Predicated region
      $region9: #{tpu_custom_call.1} parent=5 // pred_check
        _
      $region10: #{tpu_custom_call.1} parent=5 // pred_check_branch
        %231 = sbr.rel (%p228) target = $region12
      $region11: #{tpu_custom_call.1} parent=5 // pred_region
        %s232 = ssub.s32 %s19, 1
        // Predicated region
        $region13: #{tpu_custom_call.1} parent=11 // pred_check
          %p233 = pneg %p66
        $region14: #{tpu_custom_call.1} parent=11 // pred_check_branch
          %235 = sbr.rel (%p233) target = $region16
        $region15: #{tpu_custom_call.1} parent=11 // pred_region
          %237 = vsyncadd [#allocation4], 0
          %s238 = sshll.u32 %s1, 4
          %s239 = int_to_ptr.hbm [resolvable:$true] %s238
          %s240 = sshll.u32 [#allocation3], 4
          %s241 = int_to_ptr.vmem [resolvable:$true] %s240
          %246 = dma.hbm_to_vmem [thread:$0]  %s239, 192, %s241, [#allocation4], 64, 64, 4
        $region16: #{tpu_custom_call.1} parent=11 // pred_fallthru
          _
        // Predicated region
        $region17: #{tpu_custom_call.1} parent=11 // pred_check
          %p247 = pneg %p87
        $region18: #{tpu_custom_call.1} parent=11 // pred_check_branch
          %249 = sbr.rel (%p247) target = $region20
        $region19: #{tpu_custom_call.1} parent=11 // pred_region
          _
        $region20: #{tpu_custom_call.1} parent=11 // pred_fallthru
          _
        // Predicated region
        $region21: #{tpu_custom_call.1} parent=11 // pred_check
          %p250 = pneg %p108
        $region22: #{tpu_custom_call.1} parent=11 // pred_check_branch
          %252 = sbr.rel (%p250) target = $region24
        $region23: #{tpu_custom_call.1} parent=11 // pred_region
          _
        $region24: #{tpu_custom_call.1} parent=11 // pred_fallthru
          _
        // Predicated region
        $region25: #{tpu_custom_call.1} parent=11 // pred_check
          %p253 = pneg %p129
        $region26: #{tpu_custom_call.1} parent=11 // pred_check_branch
          %255 = sbr.rel (%p253) target = $region28
        $region27: #{tpu_custom_call.1} parent=11 // pred_region
          %257 = vsyncadd [#allocation7], 0
          %s258 = sshll.u32 %s4, 4
          %s259 = int_to_ptr.hbm [resolvable:$true] %s258
          %s260 = sshll.u32 [#allocation6], 4
          %s261 = int_to_ptr.vmem [resolvable:$true] %s260
          %266 = dma.hbm_to_vmem [thread:$0]  %s259, 256, %s261, [#allocation7], 64, 64, 4
        $region28: #{tpu_custom_call.1} parent=11 // pred_fallthru
          _
        // Predicated region
        $region29: #{tpu_custom_call.1} parent=11 // pred_check
          %p267 = pneg %p150
        $region30: #{tpu_custom_call.1} parent=11 // pred_check_branch
          %269 = sbr.rel (%p267) target = $region32
        $region31: #{tpu_custom_call.1} parent=11 // pred_region
          _
        $region32: #{tpu_custom_call.1} parent=11 // pred_fallthru
          _
        // Predicated region
        $region33: #{tpu_custom_call.1} parent=11 // pred_check
          %p270 = pneg %p171
        $region34: #{tpu_custom_call.1} parent=11 // pred_check_branch
          %272 = sbr.rel (%p270) target = $region36
        $region35: #{tpu_custom_call.1} parent=11 // pred_region
          _
        $region36: #{tpu_custom_call.1} parent=11 // pred_fallthru
          _
        // Predicated region
        $region37: #{tpu_custom_call.1} parent=11 // pred_check
          %p273 = pneg %p192
        $region38: #{tpu_custom_call.1} parent=11 // pred_check_branch
          %275 = sbr.rel (%p273) target = $region40
        $region39: #{tpu_custom_call.1} parent=11 // pred_region
          _
        $region40: #{tpu_custom_call.1} parent=11 // pred_fallthru
          _
      $region12: #{tpu_custom_call.1} parent=5 // pred_fallthru
        _
      %p276 = scmp.lt.s32.totalorder %s19, 2
      // Predicated region
      $region41: #{tpu_custom_call.1} parent=5 // pred_check
        %p277 = pneg %p276
      $region42: #{tpu_custom_call.1} parent=5 // pred_check_branch
        %279 = sbr.rel (%p277) target = $region44
      $region43: #{tpu_custom_call.1} parent=5 // pred_region
        // Predicated region
        $region45: #{tpu_custom_call.1} parent=43 // pred_check
          %p280 = pneg %p39
        $region46: #{tpu_custom_call.1} parent=43 // pred_check_branch
          %282 = sbr.rel (%p280) target = $region48
        $region47: #{tpu_custom_call.1} parent=43 // pred_region
          %p283 = scmp.lt.s32.totalorder %s19, 1
          %s284 = scalar_select %p283, %s19, 1
          %s285 = smul.addr %s284, 8
          %s286 = scalar_lea.vmem %s0, %s285
        $region48: #{tpu_custom_call.1} parent=43 // pred_fallthru
          _
      $region44: #{tpu_custom_call.1} parent=5 // pred_fallthru
        _
      %p287 = scmp.le.s32.totalorder 1, %s19
      %p288 = scmp.lt.s32.totalorder %s19, 3
      %p289 = pnand %p287, %p288
      %p290 = pneg %p289
      // Predicated region
      $region49: #{tpu_custom_call.1} parent=5 // pred_check
        _
      $region50: #{tpu_custom_call.1} parent=5 // pred_check_branch
        %292 = sbr.rel (%p289) target = $region52
      $region51: #{tpu_custom_call.1} parent=5 // pred_region
        %s293 = ssub.s32 %s19, 1
        // Predicated region
        $region53: #{tpu_custom_call.1} parent=51 // pred_check
          %p294 = pneg %p66
        $region54: #{tpu_custom_call.1} parent=51 // pred_check_branch
          %296 = sbr.rel (%p294) target = $region56
        $region55: #{tpu_custom_call.1} parent=51 // pred_region
          %298 = dma.done [#allocation4], 192
        $region56: #{tpu_custom_call.1} parent=51 // pred_fallthru
          _
        // Predicated region
        $region57: #{tpu_custom_call.1} parent=51 // pred_check
          %p299 = pneg %p129
        $region58: #{tpu_custom_call.1} parent=51 // pred_check_branch
          %301 = sbr.rel (%p299) target = $region60
        $region59: #{tpu_custom_call.1} parent=51 // pred_region
          %303 = dma.done [#allocation7], 256
        $region60: #{tpu_custom_call.1} parent=51 // pred_fallthru
          _
        %p304 = scmp.lt.s32.totalorder %s24, 1
        %s305 = scalar_select %p304, %s24, 1
        %s306 = smul.addr %s305, 8
        %s307 = scalar_lea.vmem %s0, %s306
        %p308 = pneg %p45
        %p309 = pneg %p42
        %p310 = pneg %p66
        %p311 = pneg %p63
        %p312 = pneg %p87
        %p313 = pneg %p84
        %p314 = pneg %p108
        %p315 = pneg %p105
        %p316 = pneg %p129
        %p317 = pneg %p126
        %p318 = pneg %p150
        %p319 = pneg %p147
        %p320 = pneg %p171
        %p321 = pneg %p168
        %p322 = pneg %p192
        %p323 = pneg %p189
        %p324 = pneg %p218
        %p325 = pneg %p215
        %s326 = sand.u32 %s205, 1
        %s327 = scalar_lea.sflag [#allocation5], %s326
        %s328 = sand.u32 %s205, 1
        %s329 = smul.addr %s328, 8
        %s330 = scalar_lea.vmem [#allocation8], %s329
        %p331 = scmp.lt.s32.totalorder %s24, 1
        %s332 = scalar_select %p331, %s24, 1
        %s333 = smul.addr %s332, 8
        %s334 = scalar_lea.vmem %s0, %s333
        %v336 = vld [vmem:[%s334] sm:$0xff]
        %v337 = vld [vmem:[#allocation3] sm:$0xf]
        %s338 = scalar_lea.vmem [#allocation3], 4
        %v339 = vld [vmem:[%s338] sm:$0xf]
        %s340 = scalar_lea.vmem [#allocation3], 8
        %v341 = vld [vmem:[%s340] sm:$0xf]
        %v342 = vld [vmem:[%s6] sm:$0x1]
        %v343 = vld [vmem:[%s7] sm:$0x1]
        %v344 = vmul.f32 %v336, %v336
        %vm345 = vcmask 261120
        %v346 = vsel %vm345, %v344, 0.0
        %347 = vadd.xlane.f32.xlu0 %v346
        %v348 = vpop.xlane.xlu0 %347
        %v349 = vrcp.pop 32.0
        %v350 = vmul.f32 32.0, %v349
        %v351 = vsub.f32 1.0, %v350
        %v352 = vmul.f32 %v349, %v351
        %v353 = vadd.f32 %v349, %v352
        %vm354 = vweird.f32 %v349
        %v355 = vsel %vm354, %v349, %v353
        %v356 = vmul.f32 %v348, %v355
        %v357 = vadd.f32 %v356, 1e-06
        %v358 = vrsqrt.pop %v357
        %v359 = vmul.f32 %v358, %v357
        %v360 = vmul.f32 %v359, %v358
        %v361 = vmul.f32 0.5, %v360
        %v362 = vsub.f32 1.5, %v361
        %v363 = vmul.f32 %v358, %v362
        %vm364 = vweird.f32 %v357
        %vm365 = vweird.f32 %v358
        %vm366 = vmor %vm364, %vm365
        %v367 = vsel %vm366, %v358, %v363
        %v368 = vmul.f32 %v336, %v367
        %v370 = vperm.slane %v342, 0
        %v372 = vmul.f32 %v370, %v368
        %v373 = vpack.c.bf16 %v372, %v372
        %v374 = vld [vmem:[%s2] sm:$0xf]
        %v375 = vld [vmem:[%s2 + $0x4] sm:$0xf]
        %v376 = vld [vmem:[%s2 + $0x8] sm:$0xf]
        %v377 = vld [vmem:[%s2 + $0xc] sm:$0xf]
        %v382 = vunpack.c.l.b16 %v374
        %v383 = vunpack.c.l.b16 %v375
        %v384 = vunpack.c.l.b16 %v376
        %v385 = vunpack.c.l.b16 %v377
        %v386 = vpack.c.b16 %v383, %v382
        %v387 = vpack.c.b16 %v385, %v384
        %v391 = vsel %vm345, %v373, 0
        %393 = vmatpush.bf16.msra.mxu0 0
        %394 = vmatpush.bf16.msra.mxu0 0
        %395 = vmatpush.bf16.msra.mxu0 0
        %396 = vmatpush.bf16.msra.mxu0 0
        %397 = vmatpush.bf16.msra.mxu0 0
        %398 = vmatpush.bf16.msra.mxu0 0
        %399 = vmatpush.bf16.msra.mxu0 %v387
        %400 = vmatpush.bf16.msra.mxu0 %v386
        %401 = vmatmul.bf16.gmra.mxu0 %v391
        %v402 = vpop.f32.mrf.mxu0
        %v403 = vadd.f32 0.0, %v402
        %v404 = vpop.f32.mrf.mxu0
        %405 = vdwg.mxu0
        %v406 = vpack.c.bf16 %v403, %v403
        %v407 = vunpack.c.l.bf16 %v337
        %v408 = vmul.f32 %v403, %v407
        %410 = vrot.lane.b32.xlu0 %v403, 124
        %v411 = vpop.permute.xlu0 %410
        %413 = vrot.lane.b32.xlu0 %v403, 28
        %v414 = vpop.permute.xlu0 %413
        %vm416 = vcmask 228352
        %v417 = vsel %vm416, %v411, %v414
        %v418 = vunpack.c.l.bf16 %v339
        %v419 = vmul.f32 %v417, %v418
        %v420 = vadd.f32 %v408, %v419
        %421 = vrot.lane.b32.xlu0 %v403, 100
        %v422 = vpop.permute.xlu0 %421
        %424 = vrot.lane.b32.xlu0 %v403, 4
        %v425 = vpop.permute.xlu0 %424
        %vm427 = vcmask 31744
        %v428 = vsel %vm427, %v422, %v425
        %v429 = vunpack.c.l.bf16 %v341
        %v430 = vmul.f32 %v428, %v429
        %v431 = vadd.f32 %v420, %v430
        %433 = vrot.lane.b32.xlu0 %v407, 32
        %v434 = vpop.permute.xlu0 %433
        %v436 = vmul.f32 %v403, %v434
        %437 = vrot.lane.b32.xlu0 %v403, 92
        %v438 = vpop.permute.xlu0 %437
        %v440 = vsel %vm416, %v438, %v411
        %v441 = vmul.f32 %v440, %v418
        %443 = vrot.lane.b32.xlu0 %v441, 32
        %v444 = vpop.permute.xlu0 %443
        %v446 = vadd.f32 %v436, %v444
        %447 = vrot.lane.b32.xlu0 %v403, 68
        %v448 = vpop.permute.xlu0 %447
        %v450 = vsel %vm427, %v448, %v422
        %v451 = vmul.f32 %v450, %v429
        %453 = vrot.lane.b32.xlu0 %v451, 32
        %v454 = vpop.permute.xlu0 %453
        %v456 = vadd.f32 %v446, %v454
        %v457 = vpack.c.bf16 %v431, %v431
        %v458 = vpack.c.bf16 %v456, %v456
        %v459 = vlaneseq
        %v460 = vshrl.u32 %v459, 7
        %v461 = vlaneseq
        %v462 = vand.u32 %v461, 127
        %vm463 = vcmp.le.s32.totalorder %v462, %v460
        %v465 = vunpack.c.l.b16 %v458
        %v466 = vpack.c.b16 %v465, %v465
        %467 = vrot.lane.b32.xlu0 %v466, 96
        %v468 = vpop.permute.xlu0 %467
        %vm469 = vcmask 64512
        %v471 = vsel %vm469, %v457, 0
        %v474 = vsel %vm469, %v468, 0
        %476 = vmatpush.bf16.xpose.msra.mxu0 0
        %477 = vmatpush.bf16.xpose.msra.mxu0 0
        %478 = vmatpush.bf16.xpose.msra.mxu0 0
        %479 = vmatpush.bf16.xpose.msra.mxu0 0
        %480 = vmatpush.bf16.xpose.msra.mxu0 0
        %481 = vmatpush.bf16.xpose.msra.mxu0 0
        %482 = vmatpush.bf16.xpose.msra.mxu0 0
        %483 = vmatpush.bf16.xpose.msra.mxu0 %v474
        %484 = vmatmul.bf16.gmra.mxu0 %v471
        %v485 = vpop.f32.mrf.mxu0
        %v486 = vadd.f32 0.0, %v485
        %v487 = vpop.f32.mrf.mxu0
        %488 = vdwg.mxu0
        %v489 = vsel %vm463, %v486, -1e+30
        %v490 = vsel %vm469, %v489, -inf
        %491 = vmax.xlane.f32.xlu0 %v490
        %v492 = vpop.xlane.xlu0 %491
        %v493 = vsub.f32 %v489, %v492
        %v494 = vmul.f32 %v493, 1.442695
        %v495 = vpow.pop %v494
        %v496 = vsel %vm469, %v495, 0.0
        %497 = vadd.xlane.f32.xlu0 %v496
        %v498 = vpop.xlane.xlu0 %497
        %v499 = vrcp.pop %v498
        %v500 = vmul.f32 %v495, %v499
        %v501 = vpack.c.bf16 %v500, %v500
        %v503 = vunpack.c.l.b16 %v406
        %v504 = vpack.c.b16 %v503, %v503
        %505 = vrot.lane.b32.xlu0 %v504, 64
        %v506 = vpop.permute.xlu0 %505
        %v508 = vsel %vm469, %v501, 0
        %vm510 = vcmask 1043456
        %v512 = vsel %vm510, %v506, 0
        %514 = vmatpush.bf16.msra.mxu0 0
        %515 = vmatpush.bf16.msra.mxu0 0
        %516 = vmatpush.bf16.msra.mxu0 0
        %517 = vmatpush.bf16.msra.mxu0 0
        %518 = vmatpush.bf16.msra.mxu0 0
        %519 = vmatpush.bf16.msra.mxu0 0
        %520 = vmatpush.bf16.msra.mxu0 0
        %521 = vmatpush.bf16.msra.mxu0 %v512
        %522 = vmatmul.bf16.gmra.mxu0 %v508
        %v523 = vpop.f32.mrf.mxu0
        %v524 = vadd.f32 0.0, %v523
        %v525 = vpop.f32.mrf.mxu0
        %526 = vdwg.mxu0
        %v527 = vpack.c.bf16 %v524, %v524
        %vm528 = vcmask 60416
        %529 = vst.msk [vmem:[#allocation2] sm:$0xf] %vm528, %v527
        %v531 = vunpack.c.l.b16 %v457
        %v532 = vpack.c.b16 %v531, %v531
        %533 = vrot.lane.b32.xlu0 %v532, 120
        %v534 = vpop.permute.xlu0 %533
        %535 = vrot.lane.b32.xlu0 %v466, 88
        %v536 = vpop.permute.xlu0 %535
        %v538 = vsel %vm469, %v534, 0
        %v541 = vsel %vm469, %v536, 0
        %543 = vmatpush.bf16.xpose.msra.mxu0 0
        %544 = vmatpush.bf16.xpose.msra.mxu0 0
        %545 = vmatpush.bf16.xpose.msra.mxu0 0
        %546 = vmatpush.bf16.xpose.msra.mxu0 0
        %547 = vmatpush.bf16.xpose.msra.mxu0 0
        %548 = vmatpush.bf16.xpose.msra.mxu0 0
        %549 = vmatpush.bf16.xpose.msra.mxu0 0
        %550 = vmatpush.bf16.xpose.msra.mxu0 %v541
        %551 = vmatmul.bf16.gmra.mxu0 %v538
        %v552 = vpop.f32.mrf.mxu0
        %v553 = vadd.f32 0.0, %v552
        %v554 = vpop.f32.mrf.mxu0
        %555 = vdwg.mxu0
        %v556 = vsel %vm463, %v553, -1e+30
        %v557 = vsel %vm469, %v556, -inf
        %558 = vmax.xlane.f32.xlu0 %v557
        %v559 = vpop.xlane.xlu0 %558
        %v560 = vsub.f32 %v556, %v559
        %v561 = vmul.f32 %v560, 1.442695
        %v562 = vpow.pop %v561
        %v563 = vsel %vm469, %v562, 0.0
        %564 = vadd.xlane.f32.xlu0 %v563
        %v565 = vpop.xlane.xlu0 %564
        %v566 = vrcp.pop %v565
        %v567 = vmul.f32 %v562, %v566
        %v568 = vpack.c.bf16 %v567, %v567
        %569 = vrot.lane.b32.xlu0 %v504, 56
        %v570 = vpop.permute.xlu0 %569
        %v572 = vsel %vm469, %v568, 0
        %v575 = vsel %vm510, %v570, 0
        %577 = vmatpush.bf16.msra.mxu0 0
        %578 = vmatpush.bf16.msra.mxu0 0
        %579 = vmatpush.bf16.msra.mxu0 0
        %580 = vmatpush.bf16.msra.mxu0 0
        %581 = vmatpush.bf16.msra.mxu0 0
        %582 = vmatpush.bf16.msra.mxu0 0
        %583 = vmatpush.bf16.msra.mxu0 0
        %584 = vmatpush.bf16.msra.mxu0 %v575
        %585 = vmatmul.bf16.gmra.mxu0 %v572
        %v586 = vpop.f32.mrf.mxu0
        %v587 = vadd.f32 0.0, %v586
        %v588 = vpop.f32.mrf.mxu0
        %589 = vdwg.mxu0
        %v590 = vpack.c.bf16 %v587, %v587
        %592 = vrot.lane.b32.xlu0 %v590, 8
        %v593 = vpop.permute.xlu0 %592
        %vm595 = vcmask 126016
        %596 = vst.msk [vmem:[#allocation2] sm:$0xf] %vm595, %v593
        %597 = vrot.lane.b32.xlu0 %v532, 112
        %v598 = vpop.permute.xlu0 %597
        %599 = vrot.lane.b32.xlu0 %v466, 80
        %v600 = vpop.permute.xlu0 %599
        %v602 = vsel %vm469, %v598, 0
        %v605 = vsel %vm469, %v600, 0
        %607 = vmatpush.bf16.xpose.msra.mxu0 0
        %608 = vmatpush.bf16.xpose.msra.mxu0 0
        %609 = vmatpush.bf16.xpose.msra.mxu0 0
        %610 = vmatpush.bf16.xpose.msra.mxu0 0
        %611 = vmatpush.bf16.xpose.msra.mxu0 0
        %612 = vmatpush.bf16.xpose.msra.mxu0 0
        %613 = vmatpush.bf16.xpose.msra.mxu0 0
        %614 = vmatpush.bf16.xpose.msra.mxu0 %v605
        %615 = vmatmul.bf16.gmra.mxu0 %v602
        %v616 = vpop.f32.mrf.mxu0
        %v617 = vadd.f32 0.0, %v616
        %v618 = vpop.f32.mrf.mxu0
        %619 = vdwg.mxu0
        %v620 = vsel %vm463, %v617, -1e+30
        %v621 = vsel %vm469, %v620, -inf
        %622 = vmax.xlane.f32.xlu0 %v621
        %v623 = vpop.xlane.xlu0 %622
        %v624 = vsub.f32 %v620, %v623
        %v625 = vmul.f32 %v624, 1.442695
        %v626 = vpow.pop %v625
        %v627 = vsel %vm469, %v626, 0.0
        %628 = vadd.xlane.f32.xlu0 %v627
        %v629 = vpop.xlane.xlu0 %628
        %v630 = vrcp.pop %v629
        %v631 = vmul.f32 %v626, %v630
        %v632 = vpack.c.bf16 %v631, %v631
        %633 = vrot.lane.b32.xlu0 %v504, 48
        %v634 = vpop.permute.xlu0 %633
        %v636 = vsel %vm469, %v632, 0
        %v639 = vsel %vm510, %v634, 0
        %641 = vmatpush.bf16.msra.mxu0 0
        %642 = vmatpush.bf16.msra.mxu0 0
        %643 = vmatpush.bf16.msra.mxu0 0
        %644 = vmatpush.bf16.msra.mxu0 0
        %645 = vmatpush.bf16.msra.mxu0 0
        %646 = vmatpush.bf16.msra.mxu0 0
        %647 = vmatpush.bf16.msra.mxu0 0
        %648 = vmatpush.bf16.msra.mxu0 %v639
        %649 = vmatmul.bf16.gmra.mxu0 %v636
        %v650 = vpop.f32.mrf.mxu0
        %v651 = vadd.f32 0.0, %v650
        %v652 = vpop.f32.mrf.mxu0
        %653 = vdwg.mxu0
        %v654 = vpack.c.bf16 %v651, %v651
        %656 = vrot.lane.b32.xlu0 %v654, 16
        %v657 = vpop.permute.xlu0 %656
        %vm659 = vcmask 191616
        %660 = vst.msk [vmem:[#allocation2] sm:$0xf] %vm659, %v657
        %661 = vrot.lane.b32.xlu0 %v532, 104
        %v662 = vpop.permute.xlu0 %661
        %663 = vrot.lane.b32.xlu0 %v466, 72
        %v664 = vpop.permute.xlu0 %663
        %v666 = vsel %vm469, %v662, 0
        %v669 = vsel %vm469, %v664, 0
        %671 = vmatpush.bf16.xpose.msra.mxu0 0
        %672 = vmatpush.bf16.xpose.msra.mxu0 0
        %673 = vmatpush.bf16.xpose.msra.mxu0 0
        %674 = vmatpush.bf16.xpose.msra.mxu0 0
        %675 = vmatpush.bf16.xpose.msra.mxu0 0
        %676 = vmatpush.bf16.xpose.msra.mxu0 0
        %677 = vmatpush.bf16.xpose.msra.mxu0 0
        %678 = vmatpush.bf16.xpose.msra.mxu0 %v669
        %679 = vmatmul.bf16.gmra.mxu0 %v666
        %v680 = vpop.f32.mrf.mxu0
        %v681 = vadd.f32 0.0, %v680
        %v682 = vpop.f32.mrf.mxu0
        %683 = vdwg.mxu0
        %v684 = vsel %vm463, %v681, -1e+30
        %v685 = vsel %vm469, %v684, -inf
        %686 = vmax.xlane.f32.xlu0 %v685
        %v687 = vpop.xlane.xlu0 %686
        %v688 = vsub.f32 %v684, %v687
        %v689 = vmul.f32 %v688, 1.442695
        %v690 = vpow.pop %v689
        %v691 = vsel %vm469, %v690, 0.0
        %692 = vadd.xlane.f32.xlu0 %v691
        %v693 = vpop.xlane.xlu0 %692
        %v694 = vrcp.pop %v693
        %v695 = vmul.f32 %v690, %v694
        %v696 = vpack.c.bf16 %v695, %v695
        %697 = vrot.lane.b32.xlu0 %v504, 40
        %v698 = vpop.permute.xlu0 %697
        %v700 = vsel %vm469, %v696, 0
        %v703 = vsel %vm510, %v698, 0
        %705 = vmatpush.bf16.msra.mxu0 0
        %706 = vmatpush.bf16.msra.mxu0 0
        %707 = vmatpush.bf16.msra.mxu0 0
        %708 = vmatpush.bf16.msra.mxu0 0
        %709 = vmatpush.bf16.msra.mxu0 0
        %710 = vmatpush.bf16.msra.mxu0 0
        %711 = vmatpush.bf16.msra.mxu0 0
        %712 = vmatpush.bf16.msra.mxu0 %v703
        %713 = vmatmul.bf16.gmra.mxu0 %v700
        %v714 = vpop.f32.mrf.mxu0
        %v715 = vadd.f32 0.0, %v714
        %v716 = vpop.f32.mrf.mxu0
        %717 = vdwg.mxu0
        %v718 = vpack.c.bf16 %v715, %v715
        %720 = vrot.lane.b32.xlu0 %v718, 24
        %v721 = vpop.permute.xlu0 %720
        %vm723 = vcmask 257216
        %724 = vst.msk [vmem:[#allocation2] sm:$0xf] %vm723, %v721
        %v725 = vld [vmem:[#allocation2] sm:$0xf]
        %v726 = vld [vmem:[%s3] sm:$0xf]
        %v727 = vld [vmem:[%s3 + $0x4] sm:$0xf]
        %v728 = vld [vmem:[%s3 + $0x8] sm:$0xf]
        %v729 = vld [vmem:[%s3 + $0xc] sm:$0xf]
        %v734 = vunpack.c.l.b16 %v726
        %v735 = vunpack.c.l.b16 %v727
        %v736 = vunpack.c.l.b16 %v728
        %v737 = vunpack.c.l.b16 %v729
        %v738 = vpack.c.b16 %v735, %v734
        %v739 = vpack.c.b16 %v737, %v736
        %v743 = vsel %vm345, %v725, 0
        %745 = vmatpush.bf16.msra.mxu0 0
        %746 = vmatpush.bf16.msra.mxu0 0
        %747 = vmatpush.bf16.msra.mxu0 0
        %748 = vmatpush.bf16.msra.mxu0 0
        %749 = vmatpush.bf16.msra.mxu0 0
        %750 = vmatpush.bf16.msra.mxu0 0
        %751 = vmatpush.bf16.msra.mxu0 %v739
        %752 = vmatpush.bf16.msra.mxu0 %v738
        %753 = vmatmul.bf16.gmra.mxu0 %v743
        %v754 = vpop.f32.mrf.mxu0
        %v755 = vadd.f32 0.0, %v754
        %v756 = vpop.f32.mrf.mxu0
        %757 = vdwg.mxu0
        %v758 = vadd.f32 %v336, %v755
        %v759 = vmul.f32 %v758, %v758
        %v760 = vsel %vm345, %v759, 0.0
        %761 = vadd.xlane.f32.xlu0 %v760
        %v762 = vpop.xlane.xlu0 %761
        %v763 = vmul.f32 %v762, %v355
        %v764 = vadd.f32 %v763, 1e-06
        %v765 = vrsqrt.pop %v764
        %v766 = vmul.f32 %v765, %v764
        %v767 = vmul.f32 %v766, %v765
        %v768 = vmul.f32 0.5, %v767
        %v769 = vsub.f32 1.5, %v768
        %v770 = vmul.f32 %v765, %v769
        %vm771 = vweird.f32 %v764
        %vm772 = vweird.f32 %v765
        %vm773 = vmor %vm771, %vm772
        %v774 = vsel %vm773, %v765, %v770
        %v775 = vmul.f32 %v758, %v774
        %v777 = vperm.slane %v343, 0
        %v779 = vmul.f32 %v777, %v775
        %v780 = vpack.c.bf16 %v779, %v779
        %v781 = vld [vmem:[#allocation6] sm:$0xf]
        %v782 = vld [vmem:[#allocation6 + $0x4] sm:$0xf]
        %v783 = vld [vmem:[#allocation6 + $0x8] sm:$0xf]
        %v784 = vld [vmem:[#allocation6 + $0xc] sm:$0xf]
        %v789 = vunpack.c.l.b16 %v781
        %v790 = vunpack.c.l.b16 %v782
        %v791 = vunpack.c.l.b16 %v783
        %v792 = vunpack.c.l.b16 %v784
        %v793 = vpack.c.b16 %v790, %v789
        %v794 = vpack.c.b16 %v792, %v791
        %v798 = vsel %vm345, %v780, 0
        %800 = vmatpush.bf16.msra.mxu0 0
        %801 = vmatpush.bf16.msra.mxu0 0
        %802 = vmatpush.bf16.msra.mxu0 0
        %803 = vmatpush.bf16.msra.mxu0 0
        %804 = vmatpush.bf16.msra.mxu0 0
        %805 = vmatpush.bf16.msra.mxu0 0
        %806 = vmatpush.bf16.msra.mxu0 %v794
        %807 = vmatpush.bf16.msra.mxu0 %v793
        %808 = vmatmul.bf16.gmra.mxu0 %v798
        %v809 = vpop.f32.mrf.mxu0
        %v810 = vadd.f32 0.0, %v809
        %v811 = vpop.f32.mrf.mxu0
        %812 = vdwg.mxu0
        %v813 = vxor.u32 %v810, 2147483648
        %v814 = vmul.f32 %v813, 1.442695
        %v815 = vpow.pop %v814
        %v816 = vadd.f32 %v815, 1.0
        %v817 = vrcp.pop %v816
        %v818 = vmul.f32 %v816, %v817
        %v819 = vsub.f32 1.0, %v818
        %v820 = vmul.f32 %v817, %v819
        %v821 = vadd.f32 %v817, %v820
        %vm822 = vweird.f32 %v816
        %vm823 = vweird.f32 %v817
        %vm824 = vmor %vm822, %vm823
        %v825 = vsel %vm824, %v817, %v821
        %v826 = vand.u32 2147483647, %v816
        %vm827 = vcmp.eq.f32.partialorder %v826, 8.507059e+37
        %v828 = vand.u32 %v816, 2147483648
        %v829 = vor.u32 1.1754944e-38, %v828
        %v830 = vsel %vm827, %v829, %v825
        %v831 = vmul.f32 1.0, %v830
        %v832 = vmul.f32 %v810, %v831
        %834 = vrot.lane.b32.xlu0 %v810, 64
        %v835 = vpop.permute.xlu0 %834
        %v837 = vmul.f32 %v832, %v835
        %v838 = vpack.c.bf16 %v837, %v837
        %v839 = vld [vmem:[%s5] sm:$0xf]
        %v840 = vld [vmem:[%s5 + $0x4] sm:$0xf]
        %v841 = vld [vmem:[%s5 + $0x8] sm:$0xf]
        %v842 = vld [vmem:[%s5 + $0xc] sm:$0xf]
        %v843 = vld [vmem:[%s5 + $0x10] sm:$0xf]
        %v844 = vld [vmem:[%s5 + $0x14] sm:$0xf]
        %v845 = vld [vmem:[%s5 + $0x18] sm:$0xf]
        %v846 = vld [vmem:[%s5 + $0x1c] sm:$0xf]
        %v855 = vunpack.c.l.b16 %v839
        %v856 = vunpack.c.l.b16 %v840
        %v857 = vunpack.c.l.b16 %v841
        %v858 = vunpack.c.l.b16 %v842
        %v859 = vunpack.c.l.b16 %v843
        %v860 = vunpack.c.l.b16 %v844
        %v861 = vunpack.c.l.b16 %v845
        %v862 = vunpack.c.l.b16 %v846
        %v863 = vpack.c.b16 %v856, %v855
        %v864 = vpack.c.b16 %v858, %v857
        %v865 = vpack.c.b16 %v860, %v859
        %v866 = vpack.c.b16 %v862, %v861
        %vm871 = vcmask 523264
        %v873 = vsel %vm871, %v838, 0
        %875 = vmatpush.bf16.msra.mxu0 0
        %876 = vmatpush.bf16.msra.mxu0 0
        %877 = vmatpush.bf16.msra.mxu0 0
        %878 = vmatpush.bf16.msra.mxu0 0
        %879 = vmatpush.bf16.msra.mxu0 %v866
        %880 = vmatpush.bf16.msra.mxu0 %v865
        %881 = vmatpush.bf16.msra.mxu0 %v864
        %882 = vmatpush.bf16.msra.mxu0 %v863
        %883 = vmatmul.bf16.gmra.mxu0 %v873
        %v884 = vpop.f32.mrf.mxu0
        %v885 = vadd.f32 0.0, %v884
        %v886 = vpop.f32.mrf.mxu0
        %887 = vdwg.mxu0
        %v888 = vadd.f32 %v758, %v885
        %889 = vst.msk [vmem:[%s330] sm:$0xff] %vm345, %v888
        %s890 = sand.u32 %s205, 1
        %s891 = scalar_lea.sflag [#allocation5], %s890
        %s892 = sand.u32 %s205, 1
        %s893 = smul.addr %s892, 8
        %s894 = scalar_lea.vmem [#allocation8], %s893
        // Predicated region
        $region61: #{tpu_custom_call.1} parent=51 // pred_check
          %p895 = pneg %p215
        $region62: #{tpu_custom_call.1} parent=51 // pred_check_branch
          %897 = sbr.rel (%p895) target = $region64
        $region63: #{tpu_custom_call.1} parent=51 // pred_region
          %899 = vsyncadd %s891, 0
          %s900 = smul.addr %s24, 8
          %s901 = scalar_lea.hbm %s8, %s900
          %s903 = sshll.u32 %s894, 4
          %s904 = int_to_ptr.vmem [resolvable:$true] %s903
          %s905 = sshll.u32 %s901, 4
          %s906 = int_to_ptr.hbm [resolvable:$true] %s905
          %908 = dma.vmem_to_hbm [thread:$0]  %s904, 128, %s906, %s891
        $region64: #{tpu_custom_call.1} parent=51 // pred_fallthru
          _
      $region52: #{tpu_custom_call.1} parent=5 // pred_fallthru
        _
      %p909 = scmp.le.s32.totalorder 2, %s19
      // Predicated region
      $region65: #{tpu_custom_call.1} parent=5 // pred_check
        %p910 = pneg %p909
      $region66: #{tpu_custom_call.1} parent=5 // pred_check_branch
        %912 = sbr.rel (%p910) target = $region68
      $region67: #{tpu_custom_call.1} parent=5 // pred_region
        %s913 = ssub.s32 %s19, 2
        // Predicated region
        $region69: #{tpu_custom_call.1} parent=67 // pred_check
          %p914 = pneg %p221
        $region70: #{tpu_custom_call.1} parent=67 // pred_check_branch
          %916 = sbr.rel (%p914) target = $region72
        $region71: #{tpu_custom_call.1} parent=67 // pred_region
          %s917 = sand.u32 %s206, 1
          %s918 = scalar_lea.sflag [#allocation5], %s917
          %s919 = sand.u32 %s206, 1
          %s920 = smul.addr %s919, 8
          %s921 = scalar_lea.vmem [#allocation8], %s920
          %923 = dma.done %s918, 128
        $region72: #{tpu_custom_call.1} parent=67 // pred_fallthru
          _
      $region68: #{tpu_custom_call.1} parent=5 // pred_fallthru
        _
    $region6: #{tpu_custom_call.1} parent=1 // loop_footer
      %s23 = sadd.s32 1, %s19
    $region7: #{tpu_custom_call.1} parent=1 // loop_footer_branch
      %18 = sbr.rel target = $region3
    $region8: #{tpu_custom_call.1} parent=1 // loop_exit
      _
    %924 = vsyncpa [#allocation4], 1
    %s925 = scalar_lea.sflag [#allocation4], 1
    %926 = vsyncpa %s925, 1
    %927 = vsyncpa [#allocation7], 1
    %928 = vsyncpa [#allocation5], 1
    %s929 = scalar_lea.sflag [#allocation5], 1
    %930 = vsyncpa %s929, 1

// kernel: tpu_custom_call.1
$region0: #{tpu_custom_call.1}
  #allocation0 [shape = 'u32[]', space=smem, size = 0x4, offset = 0x4, fixed_abs, tag = 'smem constant byte address 0x4 - core index']
  #allocation1 [shape = 'u32[72,128]{1,0:T(1,128)}', space=vmem, size = 0x9000, scoped, tag = 'internal scratch']
  #allocation2 [shape = 'bf16[8,32]{1,0:T(8,128)(2,1)}', space=vmem, size = 0x800, scoped, tag = 'scratch operand']
  %s0 = inlined_call_operand.vmem [shape: f32[2,8,32], index: 0, kind: input, shape index: {}]
  %s1 = inlined_call_operand.hbm [shape: bf16[3,8,32], index: 1, kind: input, shape index: {}]
  %s2 = inlined_call_operand.vmem [shape: bf16[32,96], index: 2, kind: input, shape index: {}]
  %s3 = inlined_call_operand.vmem [shape: bf16[32,32], index: 3, kind: input, shape index: {}]
  %s4 = inlined_call_operand.hbm [shape: bf16[32,128], index: 4, kind: input, shape index: {}]
  %s5 = inlined_call_operand.vmem [shape: bf16[64,32], index: 5, kind: input, shape index: {}]
  %s6 = inlined_call_operand.vmem [shape: f32[1,32], index: 6, kind: input, shape index: {}]
  %s7 = inlined_call_operand.vmem [shape: f32[1,32], index: 7, kind: input, shape index: {}]
  %s8 = inlined_call_operand.hbm [shape: f32[2,8,32], index: 8, kind: output, shape index: {}]
  %s9 = sld [smem:[#allocation0]]
  $region73: #{tpu_custom_call.1} parent=0
    _
  %s11 = ssub.s32 1, %s9
  %s12 = scalar_select 0, %s11, %s9
  $region1: #{tpu_custom_call.1} parent=0
    #allocation3 [shape = 'u8[6144]{0}', space=vmem, size = 0x1800, scoped, tag = 'input window, operand 1, single buffered']
    #allocation4 [shape = 's32[2]{0}', space=sflag, size = 0x8, scoped, tag = 'scoped memory for tpu_custom_call.1']
    #allocation5 [shape = 's32[2]{0}', space=sflag, size = 0x8, scoped, tag = 'scoped memory for tpu_custom_call.1']
    #allocation6 [shape = 'u8[8192]{0}', space=vmem, size = 0x2000, scoped, tag = 'input window, operand 4, single buffered']
    #allocation7 [shape = 's32[1]{0}', space=sflag, size = 0x4, scoped, tag = 'scoped memory for tpu_custom_call.1']
    #allocation8 [shape = 'u8[8192]{0}', space=vmem, size = 0x2000, scoped, tag = 'output window, operand 0']
    %13 = vsyncpa [#allocation4], 0
    %14 = vsyncpa [#allocation7], 0
    %15 = vsyncpa [#allocation5], 0
    %s16 = scalar_lea.sflag [#allocation5], 1
    %17 = vsyncpa %s16, 0
    loop: start=0, step=1, limit=4
    $region2: #{tpu_custom_call.1} parent=1 // loop_pre_header
      _
    $region3: #{tpu_custom_call.1} parent=1 // loop_header
      %s19 = sphi 0, %s23
      %p20 = scmp.ge.s32.totalorder %s19, 4
      %s29 = sphi 0, %s31
      %s32 = sphi 0, %s29
      %s33 = sphi 0, %s32
      %s49 = sphi 0, %s33
      %s53 = sphi 0, %s53
      %s55 = sphi 0, %s53
      %s56 = sphi 0, %s55
      %s70 = sphi 0, %s56
      %s74 = sphi 0, %s74
      %s76 = sphi 0, %s74
      %s77 = sphi 0, %s76
      %s91 = sphi 0, %s77
      %s95 = sphi 0, %s95
      %s97 = sphi 0, %s95
      %s98 = sphi 0, %s97
      %s112 = sphi 0, %s98
      %s116 = sphi 0, %s116
      %s118 = sphi 0, %s116
      %s119 = sphi 0, %s118
      %s133 = sphi 0, %s119
      %s137 = sphi 0, %s137
      %s139 = sphi 0, %s137
      %s140 = sphi 0, %s139
      %s154 = sphi 0, %s140
      %s158 = sphi 0, %s158
      %s160 = sphi 0, %s158
      %s161 = sphi 0, %s160
      %s175 = sphi 0, %s161
      %s179 = sphi 0, %s179
      %s181 = sphi 0, %s179
      %s182 = sphi 0, %s181
      %s196 = sphi 0, %s182
      %s202 = sphi 0, %s204
      %s205 = sphi 0, %s202
      %s206 = sphi 0, %s205
      %s222 = sphi 0, %s206
    $region4: #{tpu_custom_call.1} parent=1 // loop_header_branch
      %22 = sbr.rel (%p20) target = $region8
    $region5: #{tpu_custom_call.1} parent=1 // loop_body
      %s24 = ssub.s32 %s19, 1
      %s25 = ssub.s32 %s19, 2
      %s26 = sadd.s32 %s19, 1
      %s27 = ssub.s32 %s19, %s26
      %p28 = scmp.eq.s32.totalorder %s27, 0
      %s30 = sadd.s32 %s29, 1
      %s31 = scalar_select %p28, %s29, %s30
      %p34 = pneg %p28
      %p35 = scmp.eq.s32.totalorder %s19, 1
      %p36 = por %p34, %p35
      %p37 = scmp.ne.s32.totalorder %s29, %s32
      %p38 = scmp.eq.s32.totalorder %s19, 0
      %p39 = por %p37, %p38
      %p40 = scmp.ne.s32.totalorder %s29, %s32
      %p41 = scmp.eq.s32.totalorder %s24, 1
      %p42 = por %p40, %p41
      %p43 = scmp.ne.s32.totalorder %s32, %s33
      %p44 = scmp.eq.s32.totalorder %s24, 0
      %p45 = por %p43, %p44
      %p46 = scmp.ne.s32.totalorder %s32, %s33
      %p47 = scmp.eq.s32.totalorder %s25, 1
      %p48 = por %p46, %p47
      %p50 = scmp.ne.s32.totalorder %s33, %s49
      %p51 = scmp.eq.s32.totalorder %s25, 0
      %p52 = por %p50, %p51
      %s54 = sadd.s32 %s53, 1
      %p57 = scmp.eq.s32.totalorder %s19, 1
      %p58 = scmp.ne.s32.totalorder %s53, %s55
      %p59 = scmp.eq.s32.totalorder %s19, 0
      %p60 = por %p58, %p59
      %p61 = scmp.ne.s32.totalorder %s53, %s55
      %p62 = scmp.eq.s32.totalorder %s24, 1
      %p63 = por %p61, %p62
      %p64 = scmp.ne.s32.totalorder %s55, %s56
      %p65 = scmp.eq.s32.totalorder %s24, 0
      %p66 = por %p64, %p65
      %p67 = scmp.ne.s32.totalorder %s55, %s56
      %p68 = scmp.eq.s32.totalorder %s25, 1
      %p69 = por %p67, %p68
      %p71 = scmp.ne.s32.totalorder %s56, %s70
      %p72 = scmp.eq.s32.totalorder %s25, 0
      %p73 = por %p71, %p72
      %s75 = sadd.s32 %s74, 1
      %p78 = scmp.eq.s32.totalorder %s19, 1
      %p79 = scmp.ne.s32.totalorder %s74, %s76
      %p80 = scmp.eq.s32.totalorder %s19, 0
      %p81 = por %p79, %p80
      %p82 = scmp.ne.s32.totalorder %s74, %s76
      %p83 = scmp.eq.s32.totalorder %s24, 1
      %p84 = por %p82, %p83
      %p85 = scmp.ne.s32.totalorder %s76, %s77
      %p86 = scmp.eq.s32.totalorder %s24, 0
      %p87 = por %p85, %p86
      %p88 = scmp.ne.s32.totalorder %s76, %s77
      %p89 = scmp.eq.s32.totalorder %s25, 1
      %p90 = por %p88, %p89
      %p92 = scmp.ne.s32.totalorder %s77, %s91
      %p93 = scmp.eq.s32.totalorder %s25, 0
      %p94 = por %p92, %p93
      %s96 = sadd.s32 %s95, 1
      %p99 = scmp.eq.s32.totalorder %s19, 1
      %p100 = scmp.ne.s32.totalorder %s95, %s97
      %p101 = scmp.eq.s32.totalorder %s19, 0
      %p102 = por %p100, %p101
      %p103 = scmp.ne.s32.totalorder %s95, %s97
      %p104 = scmp.eq.s32.totalorder %s24, 1
      %p105 = por %p103, %p104
      %p106 = scmp.ne.s32.totalorder %s97, %s98
      %p107 = scmp.eq.s32.totalorder %s24, 0
      %p108 = por %p106, %p107
      %p109 = scmp.ne.s32.totalorder %s97, %s98
      %p110 = scmp.eq.s32.totalorder %s25, 1
      %p111 = por %p109, %p110
      %p113 = scmp.ne.s32.totalorder %s98, %s112
      %p114 = scmp.eq.s32.totalorder %s25, 0
      %p115 = por %p113, %p114
      %s117 = sadd.s32 %s116, 1
      %p120 = scmp.eq.s32.totalorder %s19, 1
      %p121 = scmp.ne.s32.totalorder %s116, %s118
      %p122 = scmp.eq.s32.totalorder %s19, 0
      %p123 = por %p121, %p122
      %p124 = scmp.ne.s32.totalorder %s116, %s118
      %p125 = scmp.eq.s32.totalorder %s24, 1
      %p126 = por %p124, %p125
      %p127 = scmp.ne.s32.totalorder %s118, %s119
      %p128 = scmp.eq.s32.totalorder %s24, 0
      %p129 = por %p127, %p128
      %p130 = scmp.ne.s32.totalorder %s118, %s119
      %p131 = scmp.eq.s32.totalorder %s25, 1
      %p132 = por %p130, %p131
      %p134 = scmp.ne.s32.totalorder %s119, %s133
      %p135 = scmp.eq.s32.totalorder %s25, 0
      %p136 = por %p134, %p135
      %s138 = sadd.s32 %s137, 1
      %p141 = scmp.eq.s32.totalorder %s19, 1
      %p142 = scmp.ne.s32.totalorder %s137, %s139
      %p143 = scmp.eq.s32.totalorder %s19, 0
      %p144 = por %p142, %p143
      %p145 = scmp.ne.s32.totalorder %s137, %s139
      %p146 = scmp.eq.s32.totalorder %s24, 1
      %p147 = por %p145, %p146
      %p148 = scmp.ne.s32.totalorder %s139, %s140
      %p149 = scmp.eq.s32.totalorder %s24, 0
      %p150 = por %p148, %p149
      %p151 = scmp.ne.s32.totalorder %s139, %s140
      %p152 = scmp.eq.s32.totalorder %s25, 1
      %p153 = por %p151, %p152
      %p155 = scmp.ne.s32.totalorder %s140, %s154
      %p156 = scmp.eq.s32.totalorder %s25, 0
      %p157 = por %p155, %p156
      %s159 = sadd.s32 %s158, 1
      %p162 = scmp.eq.s32.totalorder %s19, 1
      %p163 = scmp.ne.s32.totalorder %s158, %s160
      %p164 = scmp.eq.s32.totalorder %s19, 0
      %p165 = por %p163, %p164
      %p166 = scmp.ne.s32.totalorder %s158, %s160
      %p167 = scmp.eq.s32.totalorder %s24, 1
      %p168 = por %p166, %p167
      %p169 = scmp.ne.s32.totalorder %s160, %s161
      %p170 = scmp.eq.s32.totalorder %s24, 0
      %p171 = por %p169, %p170
      %p172 = scmp.ne.s32.totalorder %s160, %s161
      %p173 = scmp.eq.s32.totalorder %s25, 1
      %p174 = por %p172, %p173
      %p176 = scmp.ne.s32.totalorder %s161, %s175
      %p177 = scmp.eq.s32.totalorder %s25, 0
      %p178 = por %p176, %p177
      %s180 = sadd.s32 %s179, 1
      %p183 = scmp.eq.s32.totalorder %s19, 1
      %p184 = scmp.ne.s32.totalorder %s179, %s181
      %p185 = scmp.eq.s32.totalorder %s19, 0
      %p186 = por %p184, %p185
      %p187 = scmp.ne.s32.totalorder %s179, %s181
      %p188 = scmp.eq.s32.totalorder %s24, 1
      %p189 = por %p187, %p188
      %p190 = scmp.ne.s32.totalorder %s181, %s182
      %p191 = scmp.eq.s32.totalorder %s24, 0
      %p192 = por %p190, %p191
      %p193 = scmp.ne.s32.totalorder %s181, %s182
      %p194 = scmp.eq.s32.totalorder %s25, 1
      %p195 = por %p193, %p194
      %p197 = scmp.ne.s32.totalorder %s182, %s196
      %p198 = scmp.eq.s32.totalorder %s25, 0
      %p199 = por %p197, %p198
      %s200 = ssub.s32 %s19, %s26
      %p201 = scmp.eq.s32.totalorder %s200, 0
      %s203 = sadd.s32 %s202, 1
      %s204 = scalar_select %p201, %s202, %s203
      %p207 = pneg %p201
      %p208 = scmp.eq.s32.totalorder %s19, 1
      %p209 = por %p207, %p208
      %p210 = scmp.ne.s32.totalorder %s202, %s205
      %p211 = scmp.eq.s32.totalorder %s19, 0
      %p212 = por %p210, %p211
      %p213 = scmp.ne.s32.totalorder %s202, %s205
      %p214 = scmp.eq.s32.totalorder %s24, 1
      %p215 = por %p213, %p214
      %p216 = scmp.ne.s32.totalorder %s205, %s206
      %p217 = scmp.eq.s32.totalorder %s24, 0
      %p218 = por %p216, %p217
      %p219 = scmp.ne.s32.totalorder %s205, %s206
      %p220 = scmp.eq.s32.totalorder %s25, 1
      %p221 = por %p219, %p220
      %p223 = scmp.ne.s32.totalorder %s206, %s222
      %p224 = scmp.eq.s32.totalorder %s25, 0
      %p225 = por %p223, %p224
      %p226 = scmp.le.s32.totalorder 1, %s19
      %p227 = scmp.lt.s32.totalorder %s19, 3
      %p228 = pnand %p226, %p227
      %p229 = pneg %p228
      // Predicated region
      $region9: #{tpu_custom_call.1} parent=5 // pred_check
        _
      $region10: #{tpu_custom_call.1} parent=5 // pred_check_branch
        %231 = sbr.rel (%p228) target = $region12
      $region11: #{tpu_custom_call.1} parent=5 // pred_region
        %s232 = ssub.s32 %s19, 1
        // Predicated region
        $region13: #{tpu_custom_call.1} parent=11 // pred_check
          %p233 = pneg %p66
        $region14: #{tpu_custom_call.1} parent=11 // pred_check_branch
          %235 = sbr.rel (%p233) target = $region16
        $region15: #{tpu_custom_call.1} parent=11 // pred_region
          %237 = vsyncadd [#allocation4], 0
          %s238 = sshll.u32 %s1, 4
          %s239 = int_to_ptr.hbm [resolvable:$true] %s238
          %s240 = sshll.u32 [#allocation3], 4
          %s241 = int_to_ptr.vmem [resolvable:$true] %s240
          %246 = dma.hbm_to_vmem [thread:$0]  %s239, 192, %s241, [#allocation4], 64, 64, 4
        $region16: #{tpu_custom_call.1} parent=11 // pred_fallthru
          _
        // Predicated region
        $region17: #{tpu_custom_call.1} parent=11 // pred_check
          %p247 = pneg %p87
        $region18: #{tpu_custom_call.1} parent=11 // pred_check_branch
          %249 = sbr.rel (%p247) target = $region20
        $region19: #{tpu_custom_call.1} parent=11 // pred_region
          _
        $region20: #{tpu_custom_call.1} parent=11 // pred_fallthru
          _
        // Predicated region
        $region21: #{tpu_custom_call.1} parent=11 // pred_check
          %p250 = pneg %p108
        $region22: #{tpu_custom_call.1} parent=11 // pred_check_branch
          %252 = sbr.rel (%p250) target = $region24
        $region23: #{tpu_custom_call.1} parent=11 // pred_region
          _
        $region24: #{tpu_custom_call.1} parent=11 // pred_fallthru
          _
        // Predicated region
        $region25: #{tpu_custom_call.1} parent=11 // pred_check
          %p253 = pneg %p129
        $region26: #{tpu_custom_call.1} parent=11 // pred_check_branch
          %255 = sbr.rel (%p253) target = $region28
        $region27: #{tpu_custom_call.1} parent=11 // pred_region
          %257 = vsyncadd [#allocation7], 0
          %s258 = sshll.u32 %s4, 4
          %s259 = int_to_ptr.hbm [resolvable:$true] %s258
          %s260 = sshll.u32 [#allocation6], 4
          %s261 = int_to_ptr.vmem [resolvable:$true] %s260
          %266 = dma.hbm_to_vmem [thread:$0]  %s259, 256, %s261, [#allocation7], 64, 64, 4
        $region28: #{tpu_custom_call.1} parent=11 // pred_fallthru
          _
        // Predicated region
        $region29: #{tpu_custom_call.1} parent=11 // pred_check
          %p267 = pneg %p150
        $region30: #{tpu_custom_call.1} parent=11 // pred_check_branch
          %269 = sbr.rel (%p267) target = $region32
        $region31: #{tpu_custom_call.1} parent=11 // pred_region
          _
        $region32: #{tpu_custom_call.1} parent=11 // pred_fallthru
          _
        // Predicated region
        $region33: #{tpu_custom_call.1} parent=11 // pred_check
          %p270 = pneg %p171
        $region34: #{tpu_custom_call.1} parent=11 // pred_check_branch
          %272 = sbr.rel (%p270) target = $region36
        $region35: #{tpu_custom_call.1} parent=11 // pred_region
          _
        $region36: #{tpu_custom_call.1} parent=11 // pred_fallthru
          _
        // Predicated region
        $region37: #{tpu_custom_call.1} parent=11 // pred_check
          %p273 = pneg %p192
        $region38: #{tpu_custom_call.1} parent=11 // pred_check_branch
          %275 = sbr.rel (%p273) target = $region40
        $region39: #{tpu_custom_call.1} parent=11 // pred_region
          _
        $region40: #{tpu_custom_call.1} parent=11 // pred_fallthru
          _
      $region12: #{tpu_custom_call.1} parent=5 // pred_fallthru
        _
      %p276 = scmp.lt.s32.totalorder %s19, 2
      // Predicated region
      $region41: #{tpu_custom_call.1} parent=5 // pred_check
        %p277 = pneg %p276
      $region42: #{tpu_custom_call.1} parent=5 // pred_check_branch
        %279 = sbr.rel (%p277) target = $region44
      $region43: #{tpu_custom_call.1} parent=5 // pred_region
        // Predicated region
        $region45: #{tpu_custom_call.1} parent=43 // pred_check
          %p280 = pneg %p39
        $region46: #{tpu_custom_call.1} parent=43 // pred_check_branch
          %282 = sbr.rel (%p280) target = $region48
        $region47: #{tpu_custom_call.1} parent=43 // pred_region
          %p283 = scmp.lt.s32.totalorder %s19, 1
          %s284 = scalar_select %p283, %s19, 1
          %s285 = smul.addr %s284, 8
          %s286 = scalar_lea.vmem %s0, %s285
        $region48: #{tpu_custom_call.1} parent=43 // pred_fallthru
          _
      $region44: #{tpu_custom_call.1} parent=5 // pred_fallthru
        _
      %p287 = scmp.le.s32.totalorder 1, %s19
      %p288 = scmp.lt.s32.totalorder %s19, 3
      %p289 = pnand %p287, %p288
      %p290 = pneg %p289
      // Predicated region
      $region49: #{tpu_custom_call.1} parent=5 // pred_check
        _
      $region50: #{tpu_custom_call.1} parent=5 // pred_check_branch
        %292 = sbr.rel (%p289) target = $region52
      $region51: #{tpu_custom_call.1} parent=5 // pred_region
        %s293 = ssub.s32 %s19, 1
        // Predicated region
        $region53: #{tpu_custom_call.1} parent=51 // pred_check
          %p294 = pneg %p66
        $region54: #{tpu_custom_call.1} parent=51 // pred_check_branch
          %296 = sbr.rel (%p294) target = $region56
        $region55: #{tpu_custom_call.1} parent=51 // pred_region
          %298 = dma.done [#allocation4], 192
        $region56: #{tpu_custom_call.1} parent=51 // pred_fallthru
          _
        // Predicated region
        $region57: #{tpu_custom_call.1} parent=51 // pred_check
          %p299 = pneg %p129
        $region58: #{tpu_custom_call.1} parent=51 // pred_check_branch
          %301 = sbr.rel (%p299) target = $region60
        $region59: #{tpu_custom_call.1} parent=51 // pred_region
          %303 = dma.done [#allocation7], 256
        $region60: #{tpu_custom_call.1} parent=51 // pred_fallthru
          _
        %p304 = scmp.lt.s32.totalorder %s24, 1
        %s305 = scalar_select %p304, %s24, 1
        %s306 = smul.addr %s305, 8
        %s307 = scalar_lea.vmem %s0, %s306
        %p308 = pneg %p45
        %p309 = pneg %p42
        %p310 = pneg %p66
        %p311 = pneg %p63
        %p312 = pneg %p87
        %p313 = pneg %p84
        %p314 = pneg %p108
        %p315 = pneg %p105
        %p316 = pneg %p129
        %p317 = pneg %p126
        %p318 = pneg %p150
        %p319 = pneg %p147
        %p320 = pneg %p171
        %p321 = pneg %p168
        %p322 = pneg %p192
        %p323 = pneg %p189
        %p324 = pneg %p218
        %p325 = pneg %p215
        %s326 = sand.u32 %s205, 1
        %s327 = scalar_lea.sflag [#allocation5], %s326
        %s328 = sand.u32 %s205, 1
        %s329 = smul.addr %s328, 8
        %s330 = scalar_lea.vmem [#allocation8], %s329
        %p331 = scmp.lt.s32.totalorder %s24, 1
        %s332 = scalar_select %p331, %s24, 1
        %s333 = smul.addr %s332, 8
        %s334 = scalar_lea.vmem %s0, %s333
        %v336 = vld [vmem:[%s334] sm:$0xff]
        %v337 = vld [vmem:[#allocation3] sm:$0xf]
        %s338 = scalar_lea.vmem [#allocation3], 4
        %v339 = vld [vmem:[%s338] sm:$0xf]
        %s340 = scalar_lea.vmem [#allocation3], 8
        %v341 = vld [vmem:[%s340] sm:$0xf]
        %v342 = vld [vmem:[%s6] sm:$0x1]
        %v343 = vld [vmem:[%s7] sm:$0x1]
        %v344 = vmul.f32 %v336, %v336
        %vm345 = vcmask 261120
        %v346 = vsel %vm345, %v344, 0.0
        %347 = vadd.xlane.f32.xlu0 %v346
        %v348 = vpop.xlane.xlu0 %347
        %v349 = vrcp.pop 32.0
        %v350 = vmul.f32 32.0, %v349
        %v351 = vsub.f32 1.0, %v350
        %v352 = vmul.f32 %v349, %v351
        %v353 = vadd.f32 %v349, %v352
        %vm354 = vweird.f32 %v349
        %v355 = vsel %vm354, %v349, %v353
        %v356 = vmul.f32 %v348, %v355
        %v357 = vadd.f32 %v356, 1e-06
        %v358 = vrsqrt.pop %v357
        %v359 = vmul.f32 %v358, %v357
        %v360 = vmul.f32 %v359, %v358
        %v361 = vmul.f32 0.5, %v360
        %v362 = vsub.f32 1.5, %v361
        %v363 = vmul.f32 %v358, %v362
        %vm364 = vweird.f32 %v357
        %vm365 = vweird.f32 %v358
        %vm366 = vmor %vm364, %vm365
        %v367 = vsel %vm366, %v358, %v363
        %v368 = vmul.f32 %v336, %v367
        %v370 = vperm.slane %v342, 0
        %v372 = vmul.f32 %v370, %v368
        %v373 = vpack.c.bf16 %v372, %v372
        %v374 = vld [vmem:[%s2] sm:$0xf]
        %v375 = vld [vmem:[%s2 + $0x4] sm:$0xf]
        %v376 = vld [vmem:[%s2 + $0x8] sm:$0xf]
        %v377 = vld [vmem:[%s2 + $0xc] sm:$0xf]
        %v382 = vunpack.c.l.b16 %v374
        %v383 = vunpack.c.l.b16 %v375
        %v384 = vunpack.c.l.b16 %v376
        %v385 = vunpack.c.l.b16 %v377
        %v386 = vpack.c.b16 %v383, %v382
        %v387 = vpack.c.b16 %v385, %v384
        %v391 = vsel %vm345, %v373, 0
        %393 = vmatpush.bf16.msra.mxu0 0
        %394 = vmatpush.bf16.msra.mxu0 0
        %395 = vmatpush.bf16.msra.mxu0 0
        %396 = vmatpush.bf16.msra.mxu0 0
        %397 = vmatpush.bf16.msra.mxu0 0
        %398 = vmatpush.bf16.msra.mxu0 0
        %399 = vmatpush.bf16.msra.mxu0 %v387
        %400 = vmatpush.bf16.msra.mxu0 %v386
        %401 = vmatmul.bf16.gmra.mxu0 %v391
        %v402 = vpop.f32.mrf.mxu0
        %v403 = vadd.f32 0.0, %v402
        %v404 = vpop.f32.mrf.mxu0
        %405 = vdwg.mxu0
        %v406 = vpack.c.bf16 %v403, %v403
        %v407 = vunpack.c.l.bf16 %v337
        %v408 = vmul.f32 %v403, %v407
        %410 = vrot.lane.b32.xlu0 %v403, 124
        %v411 = vpop.permute.xlu0 %410
        %413 = vrot.lane.b32.xlu0 %v403, 28
        %v414 = vpop.permute.xlu0 %413
        %vm416 = vcmask 228352
        %v417 = vsel %vm416, %v411, %v414
        %v418 = vunpack.c.l.bf16 %v339
        %v419 = vmul.f32 %v417, %v418
        %v420 = vadd.f32 %v408, %v419
        %421 = vrot.lane.b32.xlu0 %v403, 100
        %v422 = vpop.permute.xlu0 %421
        %424 = vrot.lane.b32.xlu0 %v403, 4
        %v425 = vpop.permute.xlu0 %424
        %vm427 = vcmask 31744
        %v428 = vsel %vm427, %v422, %v425
        %v429 = vunpack.c.l.bf16 %v341
        %v430 = vmul.f32 %v428, %v429
        %v431 = vadd.f32 %v420, %v430
        %433 = vrot.lane.b32.xlu0 %v407, 32
        %v434 = vpop.permute.xlu0 %433
        %v436 = vmul.f32 %v403, %v434
        %437 = vrot.lane.b32.xlu0 %v403, 92
        %v438 = vpop.permute.xlu0 %437
        %v440 = vsel %vm416, %v438, %v411
        %v441 = vmul.f32 %v440, %v418
        %443 = vrot.lane.b32.xlu0 %v441, 32
        %v444 = vpop.permute.xlu0 %443
        %v446 = vadd.f32 %v436, %v444
        %447 = vrot.lane.b32.xlu0 %v403, 68
        %v448 = vpop.permute.xlu0 %447
        %v450 = vsel %vm427, %v448, %v422
        %v451 = vmul.f32 %v450, %v429
        %453 = vrot.lane.b32.xlu0 %v451, 32
        %v454 = vpop.permute.xlu0 %453
        %v456 = vadd.f32 %v446, %v454
        %v457 = vpack.c.bf16 %v431, %v431
        %v458 = vpack.c.bf16 %v456, %v456
        %v459 = vlaneseq
        %v460 = vshrl.u32 %v459, 7
        %v461 = vlaneseq
        %v462 = vand.u32 %v461, 127
        %vm463 = vcmp.le.s32.totalorder %v462, %v460
        %v465 = vunpack.c.l.b16 %v458
        %v466 = vpack.c.b16 %v465, %v465
        %467 = vrot.lane.b32.xlu0 %v466, 96
        %v468 = vpop.permute.xlu0 %467
        %vm469 = vcmask 64512
        %v471 = vsel %vm469, %v457, 0
        %v474 = vsel %vm469, %v468, 0
        %476 = vmatpush.bf16.xpose.msra.mxu0 0
        %477 = vmatpush.bf16.xpose.msra.mxu0 0
        %478 = vmatpush.bf16.xpose.msra.mxu0 0
        %479 = vmatpush.bf16.xpose.msra.mxu0 0
        %480 = vmatpush.bf16.xpose.msra.mxu0 0
        %481 = vmatpush.bf16.xpose.msra.mxu0 0
        %482 = vmatpush.bf16.xpose.msra.mxu0 0
        %483 = vmatpush.bf16.xpose.msra.mxu0 %v474
        %484 = vmatmul.bf16.gmra.mxu0 %v471
        %v485 = vpop.f32.mrf.mxu0
        %v486 = vadd.f32 0.0, %v485
        %v487 = vpop.f32.mrf.mxu0
        %488 = vdwg.mxu0
        %v489 = vsel %vm463, %v486, -1e+30
        %v490 = vsel %vm469, %v489, -inf
        %491 = vmax.xlane.f32.xlu0 %v490
        %v492 = vpop.xlane.xlu0 %491
        %v493 = vsub.f32 %v489, %v492
        %v494 = vmul.f32 %v493, 1.442695
        %v495 = vpow.pop %v494
        %v496 = vsel %vm469, %v495, 0.0
        %497 = vadd.xlane.f32.xlu0 %v496
        %v498 = vpop.xlane.xlu0 %497
        %v499 = vrcp.pop %v498
        %v500 = vmul.f32 %v495, %v499
        %v501 = vpack.c.bf16 %v500, %v500
        %v503 = vunpack.c.l.b16 %v406
        %v504 = vpack.c.b16 %v503, %v503
        %505 = vrot.lane.b32.xlu0 %v504, 64
        %v506 = vpop.permute.xlu0 %505
        %v508 = vsel %vm469, %v501, 0
        %vm510 = vcmask 1043456
        %v512 = vsel %vm510, %v506, 0
        %514 = vmatpush.bf16.msra.mxu0 0
        %515 = vmatpush.bf16.msra.mxu0 0
        %516 = vmatpush.bf16.msra.mxu0 0
        %517 = vmatpush.bf16.msra.mxu0 0
        %518 = vmatpush.bf16.msra.mxu0 0
        %519 = vmatpush.bf16.msra.mxu0 0
        %520 = vmatpush.bf16.msra.mxu0 0
        %521 = vmatpush.bf16.msra.mxu0 %v512
        %522 = vmatmul.bf16.gmra.mxu0 %v508
        %v523 = vpop.f32.mrf.mxu0
        %v524 = vadd.f32 0.0, %v523
        %v525 = vpop.f32.mrf.mxu0
        %526 = vdwg.mxu0
        %v527 = vpack.c.bf16 %v524, %v524
        %vm528 = vcmask 60416
        %529 = vst.msk [vmem:[#allocation2] sm:$0xf] %vm528, %v527
        %v531 = vunpack.c.l.b16 %v457
        %v532 = vpack.c.b16 %v531, %v531
        %533 = vrot.lane.b32.xlu0 %v532, 120
        %v534 = vpop.permute.xlu0 %533
        %535 = vrot.lane.b32.xlu0 %v466, 88
        %v536 = vpop.permute.xlu0 %535
        %v538 = vsel %vm469, %v534, 0
        %v541 = vsel %vm469, %v536, 0
        %543 = vmatpush.bf16.xpose.msra.mxu0 0
        %544 = vmatpush.bf16.xpose.msra.mxu0 0
        %545 = vmatpush.bf16.xpose.msra.mxu0 0
        %546 = vmatpush.bf16.xpose.msra.mxu0 0
        %547 = vmatpush.bf16.xpose.msra.mxu0 0
        %548 = vmatpush.bf16.xpose.msra.mxu0 0
        %549 = vmatpush.bf16.xpose.msra.mxu0 0
        %550 = vmatpush.bf16.xpose.msra.mxu0 %v541
        %551 = vmatmul.bf16.gmra.mxu0 %v538
        %v552 = vpop.f32.mrf.mxu0
        %v553 = vadd.f32 0.0, %v552
        %v554 = vpop.f32.mrf.mxu0
        %555 = vdwg.mxu0
        %v556 = vsel %vm463, %v553, -1e+30
        %v557 = vsel %vm469, %v556, -inf
        %558 = vmax.xlane.f32.xlu0 %v557
        %v559 = vpop.xlane.xlu0 %558
        %v560 = vsub.f32 %v556, %v559
        %v561 = vmul.f32 %v560, 1.442695
        %v562 = vpow.pop %v561
        %v563 = vsel %vm469, %v562, 0.0
        %564 = vadd.xlane.f32.xlu0 %v563
        %v565 = vpop.xlane.xlu0 %564
        %v566 = vrcp.pop %v565
        %v567 = vmul.f32 %v562, %v566
        %v568 = vpack.c.bf16 %v567, %v567
        %569 = vrot.lane.b32.xlu0 %v504, 56
        %v570 = vpop.permute.xlu0 %569
        %v572 = vsel %vm469, %v568, 0
        %v575 = vsel %vm510, %v570, 0
        %577 = vmatpush.bf16.msra.mxu0 0
        %578 = vmatpush.bf16.msra.mxu0 0
        %579 = vmatpush.bf16.msra.mxu0 0
        %580 = vmatpush.bf16.msra.mxu0 0
        %581 = vmatpush.bf16.msra.mxu0 0
        %582 = vmatpush.bf16.msra.mxu0 0
        %583 = vmatpush.bf16.msra.mxu0 0
        %584 = vmatpush.bf16.msra.mxu0 %v575
        %585 = vmatmul.bf16.gmra.mxu0 %v572
        %v586 = vpop.f32.mrf.mxu0
        %v587 = vadd.f32 0.0, %v586
        %v588 = vpop.f32.mrf.mxu0
        %589 = vdwg.mxu0
        %v590 = vpack.c.bf16 %v587, %v587
        %592 = vrot.lane.b32.xlu0 %v590, 8
        %v593 = vpop.permute.xlu0 %592
        %vm595 = vcmask 126016
        %596 = vst.msk [vmem:[#allocation2] sm:$0xf] %vm595, %v593
        %597 = vrot.lane.b32.xlu0 %v532, 112
        %v598 = vpop.permute.xlu0 %597
        %599 = vrot.lane.b32.xlu0 %v466, 80
        %v600 = vpop.permute.xlu0 %599
        %v602 = vsel %vm469, %v598, 0
        %v605 = vsel %vm469, %v600, 0
        %607 = vmatpush.bf16.xpose.msra.mxu0 0
        %608 = vmatpush.bf16.xpose.msra.mxu0 0
        %609 = vmatpush.bf16.xpose.msra.mxu0 0
        %610 = vmatpush.bf16.xpose.msra.mxu0 0
        %611 = vmatpush.bf16.xpose.msra.mxu0 0
        %612 = vmatpush.bf16.xpose.msra.mxu0 0
        %613 = vmatpush.bf16.xpose.msra.mxu0 0
        %614 = vmatpush.bf16.xpose.msra.mxu0 %v605
        %615 = vmatmul.bf16.gmra.mxu0 %v602
        %v616 = vpop.f32.mrf.mxu0
        %v617 = vadd.f32 0.0, %v616
        %v618 = vpop.f32.mrf.mxu0
        %619 = vdwg.mxu0
        %v620 = vsel %vm463, %v617, -1e+30
        %v621 = vsel %vm469, %v620, -inf
        %622 = vmax.xlane.f32.xlu0 %v621
        %v623 = vpop.xlane.xlu0 %622
        %v624 = vsub.f32 %v620, %v623
        %v625 = vmul.f32 %v624, 1.442695
        %v626 = vpow.pop %v625
        %v627 = vsel %vm469, %v626, 0.0
        %628 = vadd.xlane.f32.xlu0 %v627
        %v629 = vpop.xlane.xlu0 %628
        %v630 = vrcp.pop %v629
        %v631 = vmul.f32 %v626, %v630
        %v632 = vpack.c.bf16 %v631, %v631
        %633 = vrot.lane.b32.xlu0 %v504, 48
        %v634 = vpop.permute.xlu0 %633
        %v636 = vsel %vm469, %v632, 0
        %v639 = vsel %vm510, %v634, 0
        %641 = vmatpush.bf16.msra.mxu0 0
        %642 = vmatpush.bf16.msra.mxu0 0
        %643 = vmatpush.bf16.msra.mxu0 0
        %644 = vmatpush.bf16.msra.mxu0 0
        %645 = vmatpush.bf16.msra.mxu0 0
        %646 = vmatpush.bf16.msra.mxu0 0
        %647 = vmatpush.bf16.msra.mxu0 0
        %648 = vmatpush.bf16.msra.mxu0 %v639
        %649 = vmatmul.bf16.gmra.mxu0 %v636
        %v650 = vpop.f32.mrf.mxu0
        %v651 = vadd.f32 0.0, %v650
        %v652 = vpop.f32.mrf.mxu0
        %653 = vdwg.mxu0
        %v654 = vpack.c.bf16 %v651, %v651
        %656 = vrot.lane.b32.xlu0 %v654, 16
        %v657 = vpop.permute.xlu0 %656
        %vm659 = vcmask 191616
        %660 = vst.msk [vmem:[#allocation2] sm:$0xf] %vm659, %v657
        %661 = vrot.lane.b32.xlu0 %v532, 104
        %v662 = vpop.permute.xlu0 %661
        %663 = vrot.lane.b32.xlu0 %v466, 72
        %v664 = vpop.permute.xlu0 %663
        %v666 = vsel %vm469, %v662, 0
        %v669 = vsel %vm469, %v664, 0
        %671 = vmatpush.bf16.xpose.msra.mxu0 0
        %672 = vmatpush.bf16.xpose.msra.mxu0 0
        %673 = vmatpush.bf16.xpose.msra.mxu0 0
        %674 = vmatpush.bf16.xpose.msra.mxu0 0
        %675 = vmatpush.bf16.xpose.msra.mxu0 0
        %676 = vmatpush.bf16.xpose.msra.mxu0 0
        %677 = vmatpush.bf16.xpose.msra.mxu0 0
        %678 = vmatpush.bf16.xpose.msra.mxu0 %v669
        %679 = vmatmul.bf16.gmra.mxu0 %v666
        %v680 = vpop.f32.mrf.mxu0
        %v681 = vadd.f32 0.0, %v680
        %v682 = vpop.f32.mrf.mxu0
        %683 = vdwg.mxu0
        %v684 = vsel %vm463, %v681, -1e+30
        %v685 = vsel %vm469, %v684, -inf
        %686 = vmax.xlane.f32.xlu0 %v685
        %v687 = vpop.xlane.xlu0 %686
        %v688 = vsub.f32 %v684, %v687
        %v689 = vmul.f32 %v688, 1.442695
        %v690 = vpow.pop %v689
        %v691 = vsel %vm469, %v690, 0.0
        %692 = vadd.xlane.f32.xlu0 %v691
        %v693 = vpop.xlane.xlu0 %692
        %v694 = vrcp.pop %v693
        %v695 = vmul.f32 %v690, %v694
        %v696 = vpack.c.bf16 %v695, %v695
        %697 = vrot.lane.b32.xlu0 %v504, 40
        %v698 = vpop.permute.xlu0 %697
        %v700 = vsel %vm469, %v696, 0
        %v703 = vsel %vm510, %v698, 0
        %705 = vmatpush.bf16.msra.mxu0 0
        %706 = vmatpush.bf16.msra.mxu0 0
        %707 = vmatpush.bf16.msra.mxu0 0
        %708 = vmatpush.bf16.msra.mxu0 0
        %709 = vmatpush.bf16.msra.mxu0 0
        %710 = vmatpush.bf16.msra.mxu0 0
        %711 = vmatpush.bf16.msra.mxu0 0
        %712 = vmatpush.bf16.msra.mxu0 %v703
        %713 = vmatmul.bf16.gmra.mxu0 %v700
        %v714 = vpop.f32.mrf.mxu0
        %v715 = vadd.f32 0.0, %v714
        %v716 = vpop.f32.mrf.mxu0
        %717 = vdwg.mxu0
        %v718 = vpack.c.bf16 %v715, %v715
        %720 = vrot.lane.b32.xlu0 %v718, 24
        %v721 = vpop.permute.xlu0 %720
        %vm723 = vcmask 257216
        %724 = vst.msk [vmem:[#allocation2] sm:$0xf] %vm723, %v721
        %v725 = vld [vmem:[#allocation2] sm:$0xf]
        %v726 = vld [vmem:[%s3] sm:$0xf]
        %v727 = vld [vmem:[%s3 + $0x4] sm:$0xf]
        %v728 = vld [vmem:[%s3 + $0x8] sm:$0xf]
        %v729 = vld [vmem:[%s3 + $0xc] sm:$0xf]
        %v734 = vunpack.c.l.b16 %v726
        %v735 = vunpack.c.l.b16 %v727
        %v736 = vunpack.c.l.b16 %v728
        %v737 = vunpack.c.l.b16 %v729
        %v738 = vpack.c.b16 %v735, %v734
        %v739 = vpack.c.b16 %v737, %v736
        %v743 = vsel %vm345, %v725, 0
        %745 = vmatpush.bf16.msra.mxu0 0
        %746 = vmatpush.bf16.msra.mxu0 0
        %747 = vmatpush.bf16.msra.mxu0 0
        %748 = vmatpush.bf16.msra.mxu0 0
        %749 = vmatpush.bf16.msra.mxu0 0
        %750 = vmatpush.bf16.msra.mxu0 0
        %751 = vmatpush.bf16.msra.mxu0 %v739
        %752 = vmatpush.bf16.msra.mxu0 %v738
        %753 = vmatmul.bf16.gmra.mxu0 %v743
        %v754 = vpop.f32.mrf.mxu0
        %v755 = vadd.f32 0.0, %v754
        %v756 = vpop.f32.mrf.mxu0
        %757 = vdwg.mxu0
        %v758 = vadd.f32 %v336, %v755
        %v759 = vmul.f32 %v758, %v758
        %v760 = vsel %vm345, %v759, 0.0
        %761 = vadd.xlane.f32.xlu0 %v760
        %v762 = vpop.xlane.xlu0 %761
        %v763 = vmul.f32 %v762, %v355
        %v764 = vadd.f32 %v763, 1e-06
        %v765 = vrsqrt.pop %v764
        %v766 = vmul.f32 %v765, %v764
        %v767 = vmul.f32 %v766, %v765
        %v768 = vmul.f32 0.5, %v767
        %v769 = vsub.f32 1.5, %v768
        %v770 = vmul.f32 %v765, %v769
        %vm771 = vweird.f32 %v764
        %vm772 = vweird.f32 %v765
        %vm773 = vmor %vm771, %vm772
        %v774 = vsel %vm773, %v765, %v770
        %v775 = vmul.f32 %v758, %v774
        %v777 = vperm.slane %v343, 0
        %v779 = vmul.f32 %v777, %v775
        %v780 = vpack.c.bf16 %v779, %v779
        %v781 = vld [vmem:[#allocation6] sm:$0xf]
        %v782 = vld [vmem:[#allocation6 + $0x4] sm:$0xf]
        %v783 = vld [vmem:[#allocation6 + $0x8] sm:$0xf]
        %v784 = vld [vmem:[#allocation6 + $0xc] sm:$0xf]
        %v789 = vunpack.c.l.b16 %v781
        %v790 = vunpack.c.l.b16 %v782
        %v791 = vunpack.c.l.b16 %v783
        %v792 = vunpack.c.l.b16 %v784
        %v793 = vpack.c.b16 %v790, %v789
        %v794 = vpack.c.b16 %v792, %v791
        %v798 = vsel %vm345, %v780, 0
        %800 = vmatpush.bf16.msra.mxu0 0
        %801 = vmatpush.bf16.msra.mxu0 0
        %802 = vmatpush.bf16.msra.mxu0 0
        %803 = vmatpush.bf16.msra.mxu0 0
        %804 = vmatpush.bf16.msra.mxu0 0
        %805 = vmatpush.bf16.msra.mxu0 0
        %806 = vmatpush.bf16.msra.mxu0 %v794
        %807 = vmatpush.bf16.msra.mxu0 %v793
        %808 = vmatmul.bf16.gmra.mxu0 %v798
        %v809 = vpop.f32.mrf.mxu0
        %v810 = vadd.f32 0.0, %v809
        %v811 = vpop.f32.mrf.mxu0
        %812 = vdwg.mxu0
        %v813 = vxor.u32 %v810, 2147483648
        %v814 = vmul.f32 %v813, 1.442695
        %v815 = vpow.pop %v814
        %v816 = vadd.f32 %v815, 1.0
        %v817 = vrcp.pop %v816
        %v818 = vmul.f32 %v816, %v817
        %v819 = vsub.f32 1.0, %v818
        %v820 = vmul.f32 %v817, %v819
        %v821 = vadd.f32 %v817, %v820
        %vm822 = vweird.f32 %v816
        %vm823 = vweird.f32 %v817
        %vm824 = vmor %vm822, %vm823
        %v825 = vsel %vm824, %v817, %v821
        %v826 = vand.u32 2147483647, %v816
        %vm827 = vcmp.eq.f32.partialorder %v826, 8.507059e+37
        %v828 = vand.u32 %v816, 2147483648
        %v829 = vor.u32 1.1754944e-38, %v828
        %v830 = vsel %vm827, %v829, %v825
        %v831 = vmul.f32 1.0, %v830
        %v832 = vmul.f32 %v810, %v831
        %834 = vrot.lane.b32.xlu0 %v810, 64
        %v835 = vpop.permute.xlu0 %834
        %v837 = vmul.f32 %v832, %v835
        %v838 = vpack.c.bf16 %v837, %v837
        %v839 = vld [vmem:[%s5] sm:$0xf]
        %v840 = vld [vmem:[%s5 + $0x4] sm:$0xf]
        %v841 = vld [vmem:[%s5 + $0x8] sm:$0xf]
        %v842 = vld [vmem:[%s5 + $0xc] sm:$0xf]
        %v843 = vld [vmem:[%s5 + $0x10] sm:$0xf]
        %v844 = vld [vmem:[%s5 + $0x14] sm:$0xf]
        %v845 = vld [vmem:[%s5 + $0x18] sm:$0xf]
        %v846 = vld [vmem:[%s5 + $0x1c] sm:$0xf]
        %v855 = vunpack.c.l.b16 %v839
        %v856 = vunpack.c.l.b16 %v840
        %v857 = vunpack.c.l.b16 %v841
        %v858 = vunpack.c.l.b16 %v842
        %v859 = vunpack.c.l.b16 %v843
        %v860 = vunpack.c.l.b16 %v844
        %v861 = vunpack.c.l.b16 %v845
        %v862 = vunpack.c.l.b16 %v846
        %v863 = vpack.c.b16 %v856, %v855
        %v864 = vpack.c.b16 %v858, %v857
        %v865 = vpack.c.b16 %v860, %v859
        %v866 = vpack.c.b16 %v862, %v861
        %vm871 = vcmask 523264
        %v873 = vsel %vm871, %v838, 0
        %875 = vmatpush.bf16.msra.mxu0 0
        %876 = vmatpush.bf16.msra.mxu0 0
        %877 = vmatpush.bf16.msra.mxu0 0
        %878 = vmatpush.bf16.msra.mxu0 0
        %879 = vmatpush.bf16.msra.mxu0 %v866
        %880 = vmatpush.bf16.msra.mxu0 %v865
        %881 = vmatpush.bf16.msra.mxu0 %v864
        %882 = vmatpush.bf16.msra.mxu0 %v863
        %883 = vmatmul.bf16.gmra.mxu0 %v873
        %v884 = vpop.f32.mrf.mxu0
        %v885 = vadd.f32 0.0, %v884
        %v886 = vpop.f32.mrf.mxu0
        %887 = vdwg.mxu0
        %v888 = vadd.f32 %v758, %v885
        %889 = vst.msk [vmem:[%s330] sm:$0xff] %vm345, %v888
        %s890 = sand.u32 %s205, 1
        %s891 = scalar_lea.sflag [#allocation5], %s890
        %s892 = sand.u32 %s205, 1
        %s893 = smul.addr %s892, 8
        %s894 = scalar_lea.vmem [#allocation8], %s893
        // Predicated region
        $region61: #{tpu_custom_call.1} parent=51 // pred_check
          %p895 = pneg %p215
        $region62: #{tpu_custom_call.1} parent=51 // pred_check_branch
          %897 = sbr.rel (%p895) target = $region64
        $region63: #{tpu_custom_call.1} parent=51 // pred_region
          %899 = vsyncadd %s891, 0
          %s900 = smul.addr %s24, 8
          %s901 = scalar_lea.hbm %s8, %s900
          %s903 = sshll.u32 %s894, 4
          %s904 = int_to_ptr.vmem [resolvable:$true] %s903
          %s905 = sshll.u32 %s901, 4
          %s906 = int_to_ptr.hbm [resolvable:$true] %s905
          %908 = dma.vmem_to_hbm [thread:$0]  %s904, 128, %s906, %s891
        $region64: #{tpu_custom_call.1} parent=51 // pred_fallthru
          _
      $region52: #{tpu_custom_call.1} parent=5 // pred_fallthru
        _
      %p909 = scmp.le.s32.totalorder 2, %s19
      // Predicated region
      $region65: #{tpu_custom_call.1} parent=5 // pred_check
        %p910 = pneg %p909
      $region66: #{tpu_custom_call.1} parent=5 // pred_check_branch
        %912 = sbr.rel (%p910) target = $region68
      $region67: #{tpu_custom_call.1} parent=5 // pred_region
        %s913 = ssub.s32 %s19, 2
        // Predicated region
        $region69: #{tpu_custom_call.1} parent=67 // pred_check
          %p914 = pneg %p221
        $region70: #{tpu_custom_call.1} parent=67 // pred_check_branch
          %916 = sbr.rel (%p914) target = $region72
        $region71: #{tpu_custom_call.1} parent=67 // pred_region
          %s917 = sand.u32 %s206, 1
          %s918 = scalar_lea.sflag [#allocation5], %s917
          %s919 = sand.u32 %s206, 1
          %s920 = smul.addr %s919, 8
          %s921 = scalar_lea.vmem [#allocation8], %s920
          %923 = dma.done %s918, 128
        $region72: #{tpu_custom_call.1} parent=67 // pred_fallthru
          _
      $region68: #{tpu_custom_call.1} parent=5 // pred_fallthru
        _
    $region6: #{tpu_custom_call.1} parent=1 // loop_footer
      %s23 = sadd.s32 1, %s19
    $region7: #{tpu_custom_call.1} parent=1 // loop_footer_branch
      %18 = sbr.rel target = $region3
    $region8: #{tpu_custom_call.1} parent=1 // loop_exit
      _
    %924 = vsyncpa [#allocation4], 1
    %s925 = scalar_lea.sflag [#allocation4], 1
    %926 = vsyncpa %s925, 1
    %927 = vsyncpa [#allocation7], 1
    %928 = vsyncpa [#allocation5], 1
    %s929 = scalar_lea.sflag [#allocation5], 1
    %930 = vsyncpa %s929, 1

</llo_original>
